<compile_context>
chip_gen: v5e
topology: v5e:2x2
jax: 0.10.0
libtpu: 0.0.40
codegen_flags: <defaults>
</compile_context>

<pallas_src>
import math
from functools import partial

import jax
import jax.numpy as jnp
from jax.experimental import pallas as pl
from jax.experimental.pallas import tpu as pltpu

N_PHM = 4              # 'n' of PHMLinear (quaternion-style factorization)
IN_F = 512             # in_features  (divisible by n)
OUT_F = 512            # out_features (divisible by n)
QI = IN_F // N_PHM     # 128  -> lane-aligned Kronecker blocks
QO = OUT_F // N_PHM    # 128


def _ph_linear_kernel(a_ref, st_ref, x_ref, b_ref, o_ref):
    # a_ref : SMEM (n^3,) f32, flattened A, a_ref[(i*n + p)*n + u] = A[i, p, u]
    # st_ref: VMEM (n*QI, QO) bf16, st_ref[i*QI + v, r] = S[i, r, v]  (stacked S_i^T)
    # x_ref : VMEM (TM, IN_F) f32  -- one row tile
    # b_ref : VMEM (1, OUT_F) f32
    # o_ref : VMEM (TM, OUT_F) f32
    x = x_ref[...]                                            # (TM, IN_F)

    # Hoist the n right-factor tiles: loaded once, reused for every p.
    st = [st_ref[i * QI:(i + 1) * QI, :] for i in range(N_PHM)]   # (QI, QO) bf16 each

    for p in range(N_PHM):                                    # output column block
        yp = None
        for i in range(N_PHM):
            # mixed = sum_u A[i,p,u] * x[:, u*QI:(u+1)*QI]    (cheap VPU work)
            base = (i * N_PHM + p) * N_PHM
            mixed = a_ref[base] * x[:, 0:QI]
            for u in range(1, N_PHM):
                mixed = mixed + a_ref[base + u] * x[:, u * QI:(u + 1) * QI]
            # (TM, QI) @ (QI, QO) on the MXU, bf16 operands, f32 accumulation.
            part = jnp.dot(mixed.astype(jnp.bfloat16), st[i],
                           preferred_element_type=jnp.float32)
            yp = part if yp is None else yp + part
        o_ref[:, p * QO:(p + 1) * QO] = yp + b_ref[:, p * QO:(p + 1) * QO]


def _round_up(a, b):
    return (a + b - 1) // b * b


@partial(jax.jit, static_argnames=("row_tile",))
def ph_linear_forward(x, A, S, bias, *, row_tile=256):
    """PHLinear.forward: y = x @ (sum_i kron(A_i, S_i)).T + bias.

    Accepts arbitrary leading dims on x (flattened to rows internally).
    Note: matmul runs at bf16 MXU precision (same as a default-precision f32
    dot on TPU); use an XLA HIGHEST-precision path if true-f32 accuracy is
    ever required.
    """
    lead = x.shape[:-1]
    assert x.shape[-1] == IN_F, x.shape
    rows = math.prod(lead) if lead else 1
    xf = x.reshape(rows, IN_F)

    tm = _round_up(min(row_tile, _round_up(rows, 8)), 8)
    rows_p = _round_up(rows, tm)
    if rows_p != rows:
        xf = jnp.pad(xf, ((0, rows_p - rows), (0, 0)))

    # Cheap XLA-side layout prep (kept out of the kernel):
    st = jnp.transpose(S, (0, 2, 1)).reshape(N_PHM * QI, QO).astype(jnp.bfloat16)
    a_flat = A.reshape(-1).astype(jnp.float32)                # (n^3,) scalars -> SMEM
    b2 = bias.reshape(1, OUT_F).astype(jnp.float32)

    grid = (rows_p // tm,)
    y = pl.pallas_call(
        _ph_linear_kernel,
        out_shape=jax.ShapeDtypeStruct((rows_p, OUT_F), jnp.float32),
        grid=grid,
        in_specs=[
            pl.BlockSpec(memory_space=pltpu.MemorySpace.SMEM),     # A (flattened)
            pl.BlockSpec((N_PHM * QI, QO), lambda m: (0, 0)),      # stacked S_i^T (bf16)
            pl.BlockSpec((tm, IN_F), lambda m: (m, 0)),            # x row tile
            pl.BlockSpec((1, OUT_F), lambda m: (0, 0)),            # bias
        ],
        out_specs=pl.BlockSpec((tm, OUT_F), lambda m: (m, 0)),
        compiler_params=pltpu.CompilerParams(
            dimension_semantics=("parallel",)),                    # both TCs on v7x
    )(a_flat, st, xf, b2)

    if rows_p != rows:
        y = y[:rows]
    return y.reshape(lead + (OUT_F,))


def _reference(x, A, S, bias):
    W = sum(jnp.kron(A[i], S[i]) for i in range(N_PHM))            # (out, in)
    y = jnp.einsum('...i,oi->...o', x, W,
                   precision=jax.lax.Precision.HIGHEST)
    return y + bias


if __name__ == "__main__":
    key = jax.random.PRNGKey(0)
    kx, ka, ks, kb = jax.random.split(key, 4)

    B, T = 2, 12                                                   # small ViT-ish shape
    x = jax.random.normal(kx, (B, T, IN_F), dtype=jnp.float32)
    A = 0.1 * jax.random.normal(ka, (N_PHM, N_PHM, N_PHM), dtype=jnp.float32)
    S = 0.1 * jax.random.normal(ks, (N_PHM, OUT_F // N_PHM, IN_F // N_PHM),
                                dtype=jnp.float32)
    bias = 0.1 * jax.random.normal(kb, (OUT_F,), dtype=jnp.float32)

    # row_tile=16 -> 24 rows padded to 32, 2-step parallel grid (exercises
    # padding + multi-step pipeline); production default is 256.
    out = jax.block_until_ready(ph_linear_forward(x, A, S, bias, row_tile=16))
    ref = _reference(x, A, S, bias)

    assert out.shape == (B, T, OUT_F), out.shape
    err = float(jnp.max(jnp.abs(out - ref)))
    # Tolerance covers the bf16 MXU operand path (== default-precision f32 dot).
    assert bool(jnp.allclose(out, ref, atol=2e-2, rtol=2e-2)), err

    print("KERNEL_OK")
</pallas_src>

<mosaic_0001>
module attributes {stable_mosaic.version = 11 : i64} {
  func.func @_ph_linear_kernel(%arg0: i32, %arg1: memref<64xf32, #tpu.memory_space<smem>>, %arg2: memref<512x128xbf16, #tpu.memory_space<vmem>>, %arg3: memref<16x512xf32, #tpu.memory_space<vmem>>, %arg4: memref<1x512xf32, #tpu.memory_space<vmem>>, %arg5: memref<16x512xf32, #tpu.memory_space<vmem>>) attributes {dimension_semantics = [#tpu.dimension_semantics<parallel>], iteration_bounds = array<i64: 2>, scalar_prefetch = 0 : i64, scratch_operands = 0 : i64, tpu.core_type = #tpu.core_type<tc>, window_params = [{transform_indices = @transform_0, window_bounds = array<i64: 64>}, {pipeline_mode = #tpu.pipeline_mode<synchronous>, transform_indices = @transform_1, window_bounds = array<i64: 512, 128>}, {transform_indices = @transform_2, window_bounds = array<i64: 16, 512>}, {pipeline_mode = #tpu.pipeline_mode<synchronous>, transform_indices = @transform_3, window_bounds = array<i64: 1, 512>}, {transform_indices = @transform_4, window_bounds = array<i64: 16, 512>}]} {
    %c0 = arith.constant 0 : index
    %c0_0 = arith.constant 0 : index
    %0 = vector.load %arg3[%c0, %c0_0] : memref<16x512xf32, #tpu.memory_space<vmem>>, vector<16x512xf32>
    %c0_1 = arith.constant 0 : index
    %c0_2 = arith.constant 0 : index
    %1 = vector.load %arg2[%c0_1, %c0_2] : memref<512x128xbf16, #tpu.memory_space<vmem>>, vector<128x128xbf16>
    %c128 = arith.constant 128 : index
    %c0_3 = arith.constant 0 : index
    %2 = vector.load %arg2[%c128, %c0_3] : memref<512x128xbf16, #tpu.memory_space<vmem>>, vector<128x128xbf16>
    %c256 = arith.constant 256 : index
    %c0_4 = arith.constant 0 : index
    %3 = vector.load %arg2[%c256, %c0_4] : memref<512x128xbf16, #tpu.memory_space<vmem>>, vector<128x128xbf16>
    %c384 = arith.constant 384 : index
    %c0_5 = arith.constant 0 : index
    %4 = vector.load %arg2[%c384, %c0_5] : memref<512x128xbf16, #tpu.memory_space<vmem>>, vector<128x128xbf16>
    %c0_6 = arith.constant 0 : index
    %5 = memref.load %arg1[%c0_6] : memref<64xf32, #tpu.memory_space<smem>>
    %6 = vector.extract_strided_slice %0 {offsets = [0, 0], sizes = [16, 128], strides = [1, 1]} : vector<16x512xf32> to vector<16x128xf32>
    %7 = vector.broadcast %5 : f32 to vector<16x128xf32>
    %8 = arith.mulf %7, %6 : vector<16x128xf32>
    %c1 = arith.constant 1 : index
    %9 = memref.load %arg1[%c1] : memref<64xf32, #tpu.memory_space<smem>>
    %10 = vector.extract_strided_slice %0 {offsets = [0, 128], sizes = [16, 128], strides = [1, 1]} : vector<16x512xf32> to vector<16x128xf32>
    %11 = vector.broadcast %9 : f32 to vector<16x128xf32>
    %12 = arith.mulf %11, %10 : vector<16x128xf32>
    %13 = arith.addf %8, %12 : vector<16x128xf32>
    %c2 = arith.constant 2 : index
    %14 = memref.load %arg1[%c2] : memref<64xf32, #tpu.memory_space<smem>>
    %15 = vector.extract_strided_slice %0 {offsets = [0, 256], sizes = [16, 128], strides = [1, 1]} : vector<16x512xf32> to vector<16x128xf32>
    %16 = vector.broadcast %14 : f32 to vector<16x128xf32>
    %17 = arith.mulf %16, %15 : vector<16x128xf32>
    %18 = arith.addf %13, %17 : vector<16x128xf32>
    %c3 = arith.constant 3 : index
    %19 = memref.load %arg1[%c3] : memref<64xf32, #tpu.memory_space<smem>>
    %20 = vector.extract_strided_slice %0 {offsets = [0, 384], sizes = [16, 128], strides = [1, 1]} : vector<16x512xf32> to vector<16x128xf32>
    %21 = vector.broadcast %19 : f32 to vector<16x128xf32>
    %22 = arith.mulf %21, %20 : vector<16x128xf32>
    %23 = arith.addf %18, %22 : vector<16x128xf32>
    %24 = arith.truncf %23 : vector<16x128xf32> to vector<16x128xbf16>
    %cst = arith.constant dense<0.000000e+00> : vector<16x128xf32>
    %25 = tpu.matmul %24, %1, %cst {dimension_numbers = #tpu.dot_dimension_numbers<[1], [0], [0], [1], [0, 0, 1, 1], [], []>} : vector<16x128xbf16>, vector<128x128xbf16>, vector<16x128xf32> -> vector<16x128xf32>
    %c16 = arith.constant 16 : index
    %26 = memref.load %arg1[%c16] : memref<64xf32, #tpu.memory_space<smem>>
    %27 = vector.extract_strided_slice %0 {offsets = [0, 0], sizes = [16, 128], strides = [1, 1]} : vector<16x512xf32> to vector<16x128xf32>
    %28 = vector.broadcast %26 : f32 to vector<16x128xf32>
    %29 = arith.mulf %28, %27 : vector<16x128xf32>
    %c17 = arith.constant 17 : index
    %30 = memref.load %arg1[%c17] : memref<64xf32, #tpu.memory_space<smem>>
    %31 = vector.extract_strided_slice %0 {offsets = [0, 128], sizes = [16, 128], strides = [1, 1]} : vector<16x512xf32> to vector<16x128xf32>
    %32 = vector.broadcast %30 : f32 to vector<16x128xf32>
    %33 = arith.mulf %32, %31 : vector<16x128xf32>
    %34 = arith.addf %29, %33 : vector<16x128xf32>
    %c18 = arith.constant 18 : index
    %35 = memref.load %arg1[%c18] : memref<64xf32, #tpu.memory_space<smem>>
    %36 = vector.extract_strided_slice %0 {offsets = [0, 256], sizes = [16, 128], strides = [1, 1]} : vector<16x512xf32> to vector<16x128xf32>
    %37 = vector.broadcast %35 : f32 to vector<16x128xf32>
    %38 = arith.mulf %37, %36 : vector<16x128xf32>
    %39 = arith.addf %34, %38 : vector<16x128xf32>
    %c19 = arith.constant 19 : index
    %40 = memref.load %arg1[%c19] : memref<64xf32, #tpu.memory_space<smem>>
    %41 = vector.extract_strided_slice %0 {offsets = [0, 384], sizes = [16, 128], strides = [1, 1]} : vector<16x512xf32> to vector<16x128xf32>
    %42 = vector.broadcast %40 : f32 to vector<16x128xf32>
    %43 = arith.mulf %42, %41 : vector<16x128xf32>
    %44 = arith.addf %39, %43 : vector<16x128xf32>
    %45 = arith.truncf %44 : vector<16x128xf32> to vector<16x128xbf16>
    %cst_7 = arith.constant dense<0.000000e+00> : vector<16x128xf32>
    %46 = tpu.matmul %45, %2, %cst_7 {dimension_numbers = #tpu.dot_dimension_numbers<[1], [0], [0], [1], [0, 0, 1, 1], [], []>} : vector<16x128xbf16>, vector<128x128xbf16>, vector<16x128xf32> -> vector<16x128xf32>
    %47 = arith.addf %25, %46 : vector<16x128xf32>
    %c32 = arith.constant 32 : index
    %48 = memref.load %arg1[%c32] : memref<64xf32, #tpu.memory_space<smem>>
    %49 = vector.extract_strided_slice %0 {offsets = [0, 0], sizes = [16, 128], strides = [1, 1]} : vector<16x512xf32> to vector<16x128xf32>
    %50 = vector.broadcast %48 : f32 to vector<16x128xf32>
    %51 = arith.mulf %50, %49 : vector<16x128xf32>
    %c33 = arith.constant 33 : index
    %52 = memref.load %arg1[%c33] : memref<64xf32, #tpu.memory_space<smem>>
    %53 = vector.extract_strided_slice %0 {offsets = [0, 128], sizes = [16, 128], strides = [1, 1]} : vector<16x512xf32> to vector<16x128xf32>
    %54 = vector.broadcast %52 : f32 to vector<16x128xf32>
    %55 = arith.mulf %54, %53 : vector<16x128xf32>
    %56 = arith.addf %51, %55 : vector<16x128xf32>
    %c34 = arith.constant 34 : index
    %57 = memref.load %arg1[%c34] : memref<64xf32, #tpu.memory_space<smem>>
    %58 = vector.extract_strided_slice %0 {offsets = [0, 256], sizes = [16, 128], strides = [1, 1]} : vector<16x512xf32> to vector<16x128xf32>
    %59 = vector.broadcast %57 : f32 to vector<16x128xf32>
    %60 = arith.mulf %59, %58 : vector<16x128xf32>
    %61 = arith.addf %56, %60 : vector<16x128xf32>
    %c35 = arith.constant 35 : index
    %62 = memref.load %arg1[%c35] : memref<64xf32, #tpu.memory_space<smem>>
    %63 = vector.extract_strided_slice %0 {offsets = [0, 384], sizes = [16, 128], strides = [1, 1]} : vector<16x512xf32> to vector<16x128xf32>
    %64 = vector.broadcast %62 : f32 to vector<16x128xf32>
    %65 = arith.mulf %64, %63 : vector<16x128xf32>
    %66 = arith.addf %61, %65 : vector<16x128xf32>
    %67 = arith.truncf %66 : vector<16x128xf32> to vector<16x128xbf16>
    %cst_8 = arith.constant dense<0.000000e+00> : vector<16x128xf32>
    %68 = tpu.matmul %67, %3, %cst_8 {dimension_numbers = #tpu.dot_dimension_numbers<[1], [0], [0], [1], [0, 0, 1, 1], [], []>} : vector<16x128xbf16>, vector<128x128xbf16>, vector<16x128xf32> -> vector<16x128xf32>
    %69 = arith.addf %47, %68 : vector<16x128xf32>
    %c48 = arith.constant 48 : index
    %70 = memref.load %arg1[%c48] : memref<64xf32, #tpu.memory_space<smem>>
    %71 = vector.extract_strided_slice %0 {offsets = [0, 0], sizes = [16, 128], strides = [1, 1]} : vector<16x512xf32> to vector<16x128xf32>
    %72 = vector.broadcast %70 : f32 to vector<16x128xf32>
    %73 = arith.mulf %72, %71 : vector<16x128xf32>
    %c49 = arith.constant 49 : index
    %74 = memref.load %arg1[%c49] : memref<64xf32, #tpu.memory_space<smem>>
    %75 = vector.extract_strided_slice %0 {offsets = [0, 128], sizes = [16, 128], strides = [1, 1]} : vector<16x512xf32> to vector<16x128xf32>
    %76 = vector.broadcast %74 : f32 to vector<16x128xf32>
    %77 = arith.mulf %76, %75 : vector<16x128xf32>
    %78 = arith.addf %73, %77 : vector<16x128xf32>
    %c50 = arith.constant 50 : index
    %79 = memref.load %arg1[%c50] : memref<64xf32, #tpu.memory_space<smem>>
    %80 = vector.extract_strided_slice %0 {offsets = [0, 256], sizes = [16, 128], strides = [1, 1]} : vector<16x512xf32> to vector<16x128xf32>
    %81 = vector.broadcast %79 : f32 to vector<16x128xf32>
    %82 = arith.mulf %81, %80 : vector<16x128xf32>
    %83 = arith.addf %78, %82 : vector<16x128xf32>
    %c51 = arith.constant 51 : index
    %84 = memref.load %arg1[%c51] : memref<64xf32, #tpu.memory_space<smem>>
    %85 = vector.extract_strided_slice %0 {offsets = [0, 384], sizes = [16, 128], strides = [1, 1]} : vector<16x512xf32> to vector<16x128xf32>
    %86 = vector.broadcast %84 : f32 to vector<16x128xf32>
    %87 = arith.mulf %86, %85 : vector<16x128xf32>
    %88 = arith.addf %83, %87 : vector<16x128xf32>
    %89 = arith.truncf %88 : vector<16x128xf32> to vector<16x128xbf16>
    %cst_9 = arith.constant dense<0.000000e+00> : vector<16x128xf32>
    %90 = tpu.matmul %89, %4, %cst_9 {dimension_numbers = #tpu.dot_dimension_numbers<[1], [0], [0], [1], [0, 0, 1, 1], [], []>} : vector<16x128xbf16>, vector<128x128xbf16>, vector<16x128xf32> -> vector<16x128xf32>
    %91 = arith.addf %69, %90 : vector<16x128xf32>
    %c0_10 = arith.constant 0 : index
    %c0_11 = arith.constant 0 : index
    %92 = vector.load %arg4[%c0_10, %c0_11] : memref<1x512xf32, #tpu.memory_space<vmem>>, vector<1x128xf32>
    %93 = vector.broadcast %92 : vector<1x128xf32> to vector<16x128xf32>
    %94 = arith.addf %91, %93 : vector<16x128xf32>
    %c0_12 = arith.constant 0 : index
    %c0_13 = arith.constant 0 : index
    %95 = vector.load %arg5[%c0_12, %c0_13] : memref<16x512xf32, #tpu.memory_space<vmem>>, vector<16x128xf32>
    tpu.vector_store %arg5[%c0_12, %c0_13], %94 {strides = array<i32>} : memref<16x512xf32, #tpu.memory_space<vmem>>, vector<16x128xf32>,
    %c4 = arith.constant 4 : index
    %96 = memref.load %arg1[%c4] : memref<64xf32, #tpu.memory_space<smem>>
    %97 = vector.extract_strided_slice %0 {offsets = [0, 0], sizes = [16, 128], strides = [1, 1]} : vector<16x512xf32> to vector<16x128xf32>
    %98 = vector.broadcast %96 : f32 to vector<16x128xf32>
    %99 = arith.mulf %98, %97 : vector<16x128xf32>
    %c5 = arith.constant 5 : index
    %100 = memref.load %arg1[%c5] : memref<64xf32, #tpu.memory_space<smem>>
    %101 = vector.extract_strided_slice %0 {offsets = [0, 128], sizes = [16, 128], strides = [1, 1]} : vector<16x512xf32> to vector<16x128xf32>
    %102 = vector.broadcast %100 : f32 to vector<16x128xf32>
    %103 = arith.mulf %102, %101 : vector<16x128xf32>
    %104 = arith.addf %99, %103 : vector<16x128xf32>
    %c6 = arith.constant 6 : index
    %105 = memref.load %arg1[%c6] : memref<64xf32, #tpu.memory_space<smem>>
    %106 = vector.extract_strided_slice %0 {offsets = [0, 256], sizes = [16, 128], strides = [1, 1]} : vector<16x512xf32> to vector<16x128xf32>
    %107 = vector.broadcast %105 : f32 to vector<16x128xf32>
    %108 = arith.mulf %107, %106 : vector<16x128xf32>
    %109 = arith.addf %104, %108 : vector<16x128xf32>
    %c7 = arith.constant 7 : index
    %110 = memref.load %arg1[%c7] : memref<64xf32, #tpu.memory_space<smem>>
    %111 = vector.extract_strided_slice %0 {offsets = [0, 384], sizes = [16, 128], strides = [1, 1]} : vector<16x512xf32> to vector<16x128xf32>
    %112 = vector.broadcast %110 : f32 to vector<16x128xf32>
    %113 = arith.mulf %112, %111 : vector<16x128xf32>
    %114 = arith.addf %109, %113 : vector<16x128xf32>
    %115 = arith.truncf %114 : vector<16x128xf32> to vector<16x128xbf16>
    %cst_14 = arith.constant dense<0.000000e+00> : vector<16x128xf32>
    %116 = tpu.matmul %115, %1, %cst_14 {dimension_numbers = #tpu.dot_dimension_numbers<[1], [0], [0], [1], [0, 0, 1, 1], [], []>} : vector<16x128xbf16>, vector<128x128xbf16>, vector<16x128xf32> -> vector<16x128xf32>
    %c20 = arith.constant 20 : index
    %117 = memref.load %arg1[%c20] : memref<64xf32, #tpu.memory_space<smem>>
    %118 = vector.extract_strided_slice %0 {offsets = [0, 0], sizes = [16, 128], strides = [1, 1]} : vector<16x512xf32> to vector<16x128xf32>
    %119 = vector.broadcast %117 : f32 to vector<16x128xf32>
    %120 = arith.mulf %119, %118 : vector<16x128xf32>
    %c21 = arith.constant 21 : index
    %121 = memref.load %arg1[%c21] : memref<64xf32, #tpu.memory_space<smem>>
    %122 = vector.extract_strided_slice %0 {offsets = [0, 128], sizes = [16, 128], strides = [1, 1]} : vector<16x512xf32> to vector<16x128xf32>
    %123 = vector.broadcast %121 : f32 to vector<16x128xf32>
    %124 = arith.mulf %123, %122 : vector<16x128xf32>
    %125 = arith.addf %120, %124 : vector<16x128xf32>
    %c22 = arith.constant 22 : index
    %126 = memref.load %arg1[%c22] : memref<64xf32, #tpu.memory_space<smem>>
    %127 = vector.extract_strided_slice %0 {offsets = [0, 256], sizes = [16, 128], strides = [1, 1]} : vector<16x512xf32> to vector<16x128xf32>
    %128 = vector.broadcast %126 : f32 to vector<16x128xf32>
    %129 = arith.mulf %128, %127 : vector<16x128xf32>
    %130 = arith.addf %125, %129 : vector<16x128xf32>
    %c23 = arith.constant 23 : index
    %131 = memref.load %arg1[%c23] : memref<64xf32, #tpu.memory_space<smem>>
    %132 = vector.extract_strided_slice %0 {offsets = [0, 384], sizes = [16, 128], strides = [1, 1]} : vector<16x512xf32> to vector<16x128xf32>
    %133 = vector.broadcast %131 : f32 to vector<16x128xf32>
    %134 = arith.mulf %133, %132 : vector<16x128xf32>
    %135 = arith.addf %130, %134 : vector<16x128xf32>
    %136 = arith.truncf %135 : vector<16x128xf32> to vector<16x128xbf16>
    %cst_15 = arith.constant dense<0.000000e+00> : vector<16x128xf32>
    %137 = tpu.matmul %136, %2, %cst_15 {dimension_numbers = #tpu.dot_dimension_numbers<[1], [0], [0], [1], [0, 0, 1, 1], [], []>} : vector<16x128xbf16>, vector<128x128xbf16>, vector<16x128xf32> -> vector<16x128xf32>
    %138 = arith.addf %116, %137 : vector<16x128xf32>
    %c36 = arith.constant 36 : index
    %139 = memref.load %arg1[%c36] : memref<64xf32, #tpu.memory_space<smem>>
    %140 = vector.extract_strided_slice %0 {offsets = [0, 0], sizes = [16, 128], strides = [1, 1]} : vector<16x512xf32> to vector<16x128xf32>
    %141 = vector.broadcast %139 : f32 to vector<16x128xf32>
    %142 = arith.mulf %141, %140 : vector<16x128xf32>
    %c37 = arith.constant 37 : index
    %143 = memref.load %arg1[%c37] : memref<64xf32, #tpu.memory_space<smem>>
    %144 = vector.extract_strided_slice %0 {offsets = [0, 128], sizes = [16, 128], strides = [1, 1]} : vector<16x512xf32> to vector<16x128xf32>
    %145 = vector.broadcast %143 : f32 to vector<16x128xf32>
    %146 = arith.mulf %145, %144 : vector<16x128xf32>
    %147 = arith.addf %142, %146 : vector<16x128xf32>
    %c38 = arith.constant 38 : index
    %148 = memref.load %arg1[%c38] : memref<64xf32, #tpu.memory_space<smem>>
    %149 = vector.extract_strided_slice %0 {offsets = [0, 256], sizes = [16, 128], strides = [1, 1]} : vector<16x512xf32> to vector<16x128xf32>
    %150 = vector.broadcast %148 : f32 to vector<16x128xf32>
    %151 = arith.mulf %150, %149 : vector<16x128xf32>
    %152 = arith.addf %147, %151 : vector<16x128xf32>
    %c39 = arith.constant 39 : index
    %153 = memref.load %arg1[%c39] : memref<64xf32, #tpu.memory_space<smem>>
    %154 = vector.extract_strided_slice %0 {offsets = [0, 384], sizes = [16, 128], strides = [1, 1]} : vector<16x512xf32> to vector<16x128xf32>
    %155 = vector.broadcast %153 : f32 to vector<16x128xf32>
    %156 = arith.mulf %155, %154 : vector<16x128xf32>
    %157 = arith.addf %152, %156 : vector<16x128xf32>
    %158 = arith.truncf %157 : vector<16x128xf32> to vector<16x128xbf16>
    %cst_16 = arith.constant dense<0.000000e+00> : vector<16x128xf32>
    %159 = tpu.matmul %158, %3, %cst_16 {dimension_numbers = #tpu.dot_dimension_numbers<[1], [0], [0], [1], [0, 0, 1, 1], [], []>} : vector<16x128xbf16>, vector<128x128xbf16>, vector<16x128xf32> -> vector<16x128xf32>
    %160 = arith.addf %138, %159 : vector<16x128xf32>
    %c52 = arith.constant 52 : index
    %161 = memref.load %arg1[%c52] : memref<64xf32, #tpu.memory_space<smem>>
    %162 = vector.extract_strided_slice %0 {offsets = [0, 0], sizes = [16, 128], strides = [1, 1]} : vector<16x512xf32> to vector<16x128xf32>
    %163 = vector.broadcast %161 : f32 to vector<16x128xf32>
    %164 = arith.mulf %163, %162 : vector<16x128xf32>
    %c53 = arith.constant 53 : index
    %165 = memref.load %arg1[%c53] : memref<64xf32, #tpu.memory_space<smem>>
    %166 = vector.extract_strided_slice %0 {offsets = [0, 128], sizes = [16, 128], strides = [1, 1]} : vector<16x512xf32> to vector<16x128xf32>
    %167 = vector.broadcast %165 : f32 to vector<16x128xf32>
    %168 = arith.mulf %167, %166 : vector<16x128xf32>
    %169 = arith.addf %164, %168 : vector<16x128xf32>
    %c54 = arith.constant 54 : index
    %170 = memref.load %arg1[%c54] : memref<64xf32, #tpu.memory_space<smem>>
    %171 = vector.extract_strided_slice %0 {offsets = [0, 256], sizes = [16, 128], strides = [1, 1]} : vector<16x512xf32> to vector<16x128xf32>
    %172 = vector.broadcast %170 : f32 to vector<16x128xf32>
    %173 = arith.mulf %172, %171 : vector<16x128xf32>
    %174 = arith.addf %169, %173 : vector<16x128xf32>
    %c55 = arith.constant 55 : index
    %175 = memref.load %arg1[%c55] : memref<64xf32, #tpu.memory_space<smem>>
    %176 = vector.extract_strided_slice %0 {offsets = [0, 384], sizes = [16, 128], strides = [1, 1]} : vector<16x512xf32> to vector<16x128xf32>
    %177 = vector.broadcast %175 : f32 to vector<16x128xf32>
    %178 = arith.mulf %177, %176 : vector<16x128xf32>
    %179 = arith.addf %174, %178 : vector<16x128xf32>
    %180 = arith.truncf %179 : vector<16x128xf32> to vector<16x128xbf16>
    %cst_17 = arith.constant dense<0.000000e+00> : vector<16x128xf32>
    %181 = tpu.matmul %180, %4, %cst_17 {dimension_numbers = #tpu.dot_dimension_numbers<[1], [0], [0], [1], [0, 0, 1, 1], [], []>} : vector<16x128xbf16>, vector<128x128xbf16>, vector<16x128xf32> -> vector<16x128xf32>
    %182 = arith.addf %160, %181 : vector<16x128xf32>
    %c0_18 = arith.constant 0 : index
    %c128_19 = arith.constant 128 : index
    %183 = vector.load %arg4[%c0_18, %c128_19] : memref<1x512xf32, #tpu.memory_space<vmem>>, vector<1x128xf32>
    %184 = vector.broadcast %183 : vector<1x128xf32> to vector<16x128xf32>
    %185 = arith.addf %182, %184 : vector<16x128xf32>
    %c0_20 = arith.constant 0 : index
    %c128_21 = arith.constant 128 : index
    %186 = vector.load %arg5[%c0_20, %c128_21] : memref<16x512xf32, #tpu.memory_space<vmem>>, vector<16x128xf32>
    tpu.vector_store %arg5[%c0_20, %c128_21], %185 {strides = array<i32>} : memref<16x512xf32, #tpu.memory_space<vmem>>, vector<16x128xf32>,
    %c8 = arith.constant 8 : index
    %187 = memref.load %arg1[%c8] : memref<64xf32, #tpu.memory_space<smem>>
    %188 = vector.extract_strided_slice %0 {offsets = [0, 0], sizes = [16, 128], strides = [1, 1]} : vector<16x512xf32> to vector<16x128xf32>
    %189 = vector.broadcast %187 : f32 to vector<16x128xf32>
    %190 = arith.mulf %189, %188 : vector<16x128xf32>
    %c9 = arith.constant 9 : index
    %191 = memref.load %arg1[%c9] : memref<64xf32, #tpu.memory_space<smem>>
    %192 = vector.extract_strided_slice %0 {offsets = [0, 128], sizes = [16, 128], strides = [1, 1]} : vector<16x512xf32> to vector<16x128xf32>
    %193 = vector.broadcast %191 : f32 to vector<16x128xf32>
    %194 = arith.mulf %193, %192 : vector<16x128xf32>
    %195 = arith.addf %190, %194 : vector<16x128xf32>
    %c10 = arith.constant 10 : index
    %196 = memref.load %arg1[%c10] : memref<64xf32, #tpu.memory_space<smem>>
    %197 = vector.extract_strided_slice %0 {offsets = [0, 256], sizes = [16, 128], strides = [1, 1]} : vector<16x512xf32> to vector<16x128xf32>
    %198 = vector.broadcast %196 : f32 to vector<16x128xf32>
    %199 = arith.mulf %198, %197 : vector<16x128xf32>
    %200 = arith.addf %195, %199 : vector<16x128xf32>
    %c11 = arith.constant 11 : index
    %201 = memref.load %arg1[%c11] : memref<64xf32, #tpu.memory_space<smem>>
    %202 = vector.extract_strided_slice %0 {offsets = [0, 384], sizes = [16, 128], strides = [1, 1]} : vector<16x512xf32> to vector<16x128xf32>
    %203 = vector.broadcast %201 : f32 to vector<16x128xf32>
    %204 = arith.mulf %203, %202 : vector<16x128xf32>
    %205 = arith.addf %200, %204 : vector<16x128xf32>
    %206 = arith.truncf %205 : vector<16x128xf32> to vector<16x128xbf16>
    %cst_22 = arith.constant dense<0.000000e+00> : vector<16x128xf32>
    %207 = tpu.matmul %206, %1, %cst_22 {dimension_numbers = #tpu.dot_dimension_numbers<[1], [0], [0], [1], [0, 0, 1, 1], [], []>} : vector<16x128xbf16>, vector<128x128xbf16>, vector<16x128xf32> -> vector<16x128xf32>
    %c24 = arith.constant 24 : index
    %208 = memref.load %arg1[%c24] : memref<64xf32, #tpu.memory_space<smem>>
    %209 = vector.extract_strided_slice %0 {offsets = [0, 0], sizes = [16, 128], strides = [1, 1]} : vector<16x512xf32> to vector<16x128xf32>
    %210 = vector.broadcast %208 : f32 to vector<16x128xf32>
    %211 = arith.mulf %210, %209 : vector<16x128xf32>
    %c25 = arith.constant 25 : index
    %212 = memref.load %arg1[%c25] : memref<64xf32, #tpu.memory_space<smem>>
    %213 = vector.extract_strided_slice %0 {offsets = [0, 128], sizes = [16, 128], strides = [1, 1]} : vector<16x512xf32> to vector<16x128xf32>
    %214 = vector.broadcast %212 : f32 to vector<16x128xf32>
    %215 = arith.mulf %214, %213 : vector<16x128xf32>
    %216 = arith.addf %211, %215 : vector<16x128xf32>
    %c26 = arith.constant 26 : index
    %217 = memref.load %arg1[%c26] : memref<64xf32, #tpu.memory_space<smem>>
    %218 = vector.extract_strided_slice %0 {offsets = [0, 256], sizes = [16, 128], strides = [1, 1]} : vector<16x512xf32> to vector<16x128xf32>
    %219 = vector.broadcast %217 : f32 to vector<16x128xf32>
    %220 = arith.mulf %219, %218 : vector<16x128xf32>
    %221 = arith.addf %216, %220 : vector<16x128xf32>
    %c27 = arith.constant 27 : index
    %222 = memref.load %arg1[%c27] : memref<64xf32, #tpu.memory_space<smem>>
    %223 = vector.extract_strided_slice %0 {offsets = [0, 384], sizes = [16, 128], strides = [1, 1]} : vector<16x512xf32> to vector<16x128xf32>
    %224 = vector.broadcast %222 : f32 to vector<16x128xf32>
    %225 = arith.mulf %224, %223 : vector<16x128xf32>
    %226 = arith.addf %221, %225 : vector<16x128xf32>
    %227 = arith.truncf %226 : vector<16x128xf32> to vector<16x128xbf16>
    %cst_23 = arith.constant dense<0.000000e+00> : vector<16x128xf32>
    %228 = tpu.matmul %227, %2, %cst_23 {dimension_numbers = #tpu.dot_dimension_numbers<[1], [0], [0], [1], [0, 0, 1, 1], [], []>} : vector<16x128xbf16>, vector<128x128xbf16>, vector<16x128xf32> -> vector<16x128xf32>
    %229 = arith.addf %207, %228 : vector<16x128xf32>
    %c40 = arith.constant 40 : index
    %230 = memref.load %arg1[%c40] : memref<64xf32, #tpu.memory_space<smem>>
    %231 = vector.extract_strided_slice %0 {offsets = [0, 0], sizes = [16, 128], strides = [1, 1]} : vector<16x512xf32> to vector<16x128xf32>
    %232 = vector.broadcast %230 : f32 to vector<16x128xf32>
    %233 = arith.mulf %232, %231 : vector<16x128xf32>
    %c41 = arith.constant 41 : index
    %234 = memref.load %arg1[%c41] : memref<64xf32, #tpu.memory_space<smem>>
    %235 = vector.extract_strided_slice %0 {offsets = [0, 128], sizes = [16, 128], strides = [1, 1]} : vector<16x512xf32> to vector<16x128xf32>
    %236 = vector.broadcast %234 : f32 to vector<16x128xf32>
    %237 = arith.mulf %236, %235 : vector<16x128xf32>
    %238 = arith.addf %233, %237 : vector<16x128xf32>
    %c42 = arith.constant 42 : index
    %239 = memref.load %arg1[%c42] : memref<64xf32, #tpu.memory_space<smem>>
    %240 = vector.extract_strided_slice %0 {offsets = [0, 256], sizes = [16, 128], strides = [1, 1]} : vector<16x512xf32> to vector<16x128xf32>
    %241 = vector.broadcast %239 : f32 to vector<16x128xf32>
    %242 = arith.mulf %241, %240 : vector<16x128xf32>
    %243 = arith.addf %238, %242 : vector<16x128xf32>
    %c43 = arith.constant 43 : index
    %244 = memref.load %arg1[%c43] : memref<64xf32, #tpu.memory_space<smem>>
    %245 = vector.extract_strided_slice %0 {offsets = [0, 384], sizes = [16, 128], strides = [1, 1]} : vector<16x512xf32> to vector<16x128xf32>
    %246 = vector.broadcast %244 : f32 to vector<16x128xf32>
    %247 = arith.mulf %246, %245 : vector<16x128xf32>
    %248 = arith.addf %243, %247 : vector<16x128xf32>
    %249 = arith.truncf %248 : vector<16x128xf32> to vector<16x128xbf16>
    %cst_24 = arith.constant dense<0.000000e+00> : vector<16x128xf32>
    %250 = tpu.matmul %249, %3, %cst_24 {dimension_numbers = #tpu.dot_dimension_numbers<[1], [0], [0], [1], [0, 0, 1, 1], [], []>} : vector<16x128xbf16>, vector<128x128xbf16>, vector<16x128xf32> -> vector<16x128xf32>
    %251 = arith.addf %229, %250 : vector<16x128xf32>
    %c56 = arith.constant 56 : index
    %252 = memref.load %arg1[%c56] : memref<64xf32, #tpu.memory_space<smem>>
    %253 = vector.extract_strided_slice %0 {offsets = [0, 0], sizes = [16, 128], strides = [1, 1]} : vector<16x512xf32> to vector<16x128xf32>
    %254 = vector.broadcast %252 : f32 to vector<16x128xf32>
    %255 = arith.mulf %254, %253 : vector<16x128xf32>
    %c57 = arith.constant 57 : index
    %256 = memref.load %arg1[%c57] : memref<64xf32, #tpu.memory_space<smem>>
    %257 = vector.extract_strided_slice %0 {offsets = [0, 128], sizes = [16, 128], strides = [1, 1]} : vector<16x512xf32> to vector<16x128xf32>
    %258 = vector.broadcast %256 : f32 to vector<16x128xf32>
    %259 = arith.mulf %258, %257 : vector<16x128xf32>
    %260 = arith.addf %255, %259 : vector<16x128xf32>
    %c58 = arith.constant 58 : index
    %261 = memref.load %arg1[%c58] : memref<64xf32, #tpu.memory_space<smem>>
    %262 = vector.extract_strided_slice %0 {offsets = [0, 256], sizes = [16, 128], strides = [1, 1]} : vector<16x512xf32> to vector<16x128xf32>
    %263 = vector.broadcast %261 : f32 to vector<16x128xf32>
    %264 = arith.mulf %263, %262 : vector<16x128xf32>
    %265 = arith.addf %260, %264 : vector<16x128xf32>
    %c59 = arith.constant 59 : index
    %266 = memref.load %arg1[%c59] : memref<64xf32, #tpu.memory_space<smem>>
    %267 = vector.extract_strided_slice %0 {offsets = [0, 384], sizes = [16, 128], strides = [1, 1]} : vector<16x512xf32> to vector<16x128xf32>
    %268 = vector.broadcast %266 : f32 to vector<16x128xf32>
    %269 = arith.mulf %268, %267 : vector<16x128xf32>
    %270 = arith.addf %265, %269 : vector<16x128xf32>
    %271 = arith.truncf %270 : vector<16x128xf32> to vector<16x128xbf16>
    %cst_25 = arith.constant dense<0.000000e+00> : vector<16x128xf32>
    %272 = tpu.matmul %271, %4, %cst_25 {dimension_numbers = #tpu.dot_dimension_numbers<[1], [0], [0], [1], [0, 0, 1, 1], [], []>} : vector<16x128xbf16>, vector<128x128xbf16>, vector<16x128xf32> -> vector<16x128xf32>
    %273 = arith.addf %251, %272 : vector<16x128xf32>
    %c0_26 = arith.constant 0 : index
    %c256_27 = arith.constant 256 : index
    %274 = vector.load %arg4[%c0_26, %c256_27] : memref<1x512xf32, #tpu.memory_space<vmem>>, vector<1x128xf32>
    %275 = vector.broadcast %274 : vector<1x128xf32> to vector<16x128xf32>
    %276 = arith.addf %273, %275 : vector<16x128xf32>
    %c0_28 = arith.constant 0 : index
    %c256_29 = arith.constant 256 : index
    %277 = vector.load %arg5[%c0_28, %c256_29] : memref<16x512xf32, #tpu.memory_space<vmem>>, vector<16x128xf32>
    tpu.vector_store %arg5[%c0_28, %c256_29], %276 {strides = array<i32>} : memref<16x512xf32, #tpu.memory_space<vmem>>, vector<16x128xf32>,
    %c12 = arith.constant 12 : index
    %278 = memref.load %arg1[%c12] : memref<64xf32, #tpu.memory_space<smem>>
    %279 = vector.extract_strided_slice %0 {offsets = [0, 0], sizes = [16, 128], strides = [1, 1]} : vector<16x512xf32> to vector<16x128xf32>
    %280 = vector.broadcast %278 : f32 to vector<16x128xf32>
    %281 = arith.mulf %280, %279 : vector<16x128xf32>
    %c13 = arith.constant 13 : index
    %282 = memref.load %arg1[%c13] : memref<64xf32, #tpu.memory_space<smem>>
    %283 = vector.extract_strided_slice %0 {offsets = [0, 128], sizes = [16, 128], strides = [1, 1]} : vector<16x512xf32> to vector<16x128xf32>
    %284 = vector.broadcast %282 : f32 to vector<16x128xf32>
    %285 = arith.mulf %284, %283 : vector<16x128xf32>
    %286 = arith.addf %281, %285 : vector<16x128xf32>
    %c14 = arith.constant 14 : index
    %287 = memref.load %arg1[%c14] : memref<64xf32, #tpu.memory_space<smem>>
    %288 = vector.extract_strided_slice %0 {offsets = [0, 256], sizes = [16, 128], strides = [1, 1]} : vector<16x512xf32> to vector<16x128xf32>
    %289 = vector.broadcast %287 : f32 to vector<16x128xf32>
    %290 = arith.mulf %289, %288 : vector<16x128xf32>
    %291 = arith.addf %286, %290 : vector<16x128xf32>
    %c15 = arith.constant 15 : index
    %292 = memref.load %arg1[%c15] : memref<64xf32, #tpu.memory_space<smem>>
    %293 = vector.extract_strided_slice %0 {offsets = [0, 384], sizes = [16, 128], strides = [1, 1]} : vector<16x512xf32> to vector<16x128xf32>
    %294 = vector.broadcast %292 : f32 to vector<16x128xf32>
    %295 = arith.mulf %294, %293 : vector<16x128xf32>
    %296 = arith.addf %291, %295 : vector<16x128xf32>
    %297 = arith.truncf %296 : vector<16x128xf32> to vector<16x128xbf16>
    %cst_30 = arith.constant dense<0.000000e+00> : vector<16x128xf32>
    %298 = tpu.matmul %297, %1, %cst_30 {dimension_numbers = #tpu.dot_dimension_numbers<[1], [0], [0], [1], [0, 0, 1, 1], [], []>} : vector<16x128xbf16>, vector<128x128xbf16>, vector<16x128xf32> -> vector<16x128xf32>
    %c28 = arith.constant 28 : index
    %299 = memref.load %arg1[%c28] : memref<64xf32, #tpu.memory_space<smem>>
    %300 = vector.extract_strided_slice %0 {offsets = [0, 0], sizes = [16, 128], strides = [1, 1]} : vector<16x512xf32> to vector<16x128xf32>
    %301 = vector.broadcast %299 : f32 to vector<16x128xf32>
    %302 = arith.mulf %301, %300 : vector<16x128xf32>
    %c29 = arith.constant 29 : index
    %303 = memref.load %arg1[%c29] : memref<64xf32, #tpu.memory_space<smem>>
    %304 = vector.extract_strided_slice %0 {offsets = [0, 128], sizes = [16, 128], strides = [1, 1]} : vector<16x512xf32> to vector<16x128xf32>
    %305 = vector.broadcast %303 : f32 to vector<16x128xf32>
    %306 = arith.mulf %305, %304 : vector<16x128xf32>
    %307 = arith.addf %302, %306 : vector<16x128xf32>
    %c30 = arith.constant 30 : index
    %308 = memref.load %arg1[%c30] : memref<64xf32, #tpu.memory_space<smem>>
    %309 = vector.extract_strided_slice %0 {offsets = [0, 256], sizes = [16, 128], strides = [1, 1]} : vector<16x512xf32> to vector<16x128xf32>
    %310 = vector.broadcast %308 : f32 to vector<16x128xf32>
    %311 = arith.mulf %310, %309 : vector<16x128xf32>
    %312 = arith.addf %307, %311 : vector<16x128xf32>
    %c31 = arith.constant 31 : index
    %313 = memref.load %arg1[%c31] : memref<64xf32, #tpu.memory_space<smem>>
    %314 = vector.extract_strided_slice %0 {offsets = [0, 384], sizes = [16, 128], strides = [1, 1]} : vector<16x512xf32> to vector<16x128xf32>
    %315 = vector.broadcast %313 : f32 to vector<16x128xf32>
    %316 = arith.mulf %315, %314 : vector<16x128xf32>
    %317 = arith.addf %312, %316 : vector<16x128xf32>
    %318 = arith.truncf %317 : vector<16x128xf32> to vector<16x128xbf16>
    %cst_31 = arith.constant dense<0.000000e+00> : vector<16x128xf32>
    %319 = tpu.matmul %318, %2, %cst_31 {dimension_numbers = #tpu.dot_dimension_numbers<[1], [0], [0], [1], [0, 0, 1, 1], [], []>} : vector<16x128xbf16>, vector<128x128xbf16>, vector<16x128xf32> -> vector<16x128xf32>
    %320 = arith.addf %298, %319 : vector<16x128xf32>
    %c44 = arith.constant 44 : index
    %321 = memref.load %arg1[%c44] : memref<64xf32, #tpu.memory_space<smem>>
    %322 = vector.extract_strided_slice %0 {offsets = [0, 0], sizes = [16, 128], strides = [1, 1]} : vector<16x512xf32> to vector<16x128xf32>
    %323 = vector.broadcast %321 : f32 to vector<16x128xf32>
    %324 = arith.mulf %323, %322 : vector<16x128xf32>
    %c45 = arith.constant 45 : index
    %325 = memref.load %arg1[%c45] : memref<64xf32, #tpu.memory_space<smem>>
    %326 = vector.extract_strided_slice %0 {offsets = [0, 128], sizes = [16, 128], strides = [1, 1]} : vector<16x512xf32> to vector<16x128xf32>
    %327 = vector.broadcast %325 : f32 to vector<16x128xf32>
    %328 = arith.mulf %327, %326 : vector<16x128xf32>
    %329 = arith.addf %324, %328 : vector<16x128xf32>
    %c46 = arith.constant 46 : index
    %330 = memref.load %arg1[%c46] : memref<64xf32, #tpu.memory_space<smem>>
    %331 = vector.extract_strided_slice %0 {offsets = [0, 256], sizes = [16, 128], strides = [1, 1]} : vector<16x512xf32> to vector<16x128xf32>
    %332 = vector.broadcast %330 : f32 to vector<16x128xf32>
    %333 = arith.mulf %332, %331 : vector<16x128xf32>
    %334 = arith.addf %329, %333 : vector<16x128xf32>
    %c47 = arith.constant 47 : index
    %335 = memref.load %arg1[%c47] : memref<64xf32, #tpu.memory_space<smem>>
    %336 = vector.extract_strided_slice %0 {offsets = [0, 384], sizes = [16, 128], strides = [1, 1]} : vector<16x512xf32> to vector<16x128xf32>
    %337 = vector.broadcast %335 : f32 to vector<16x128xf32>
    %338 = arith.mulf %337, %336 : vector<16x128xf32>
    %339 = arith.addf %334, %338 : vector<16x128xf32>
    %340 = arith.truncf %339 : vector<16x128xf32> to vector<16x128xbf16>
    %cst_32 = arith.constant dense<0.000000e+00> : vector<16x128xf32>
    %341 = tpu.matmul %340, %3, %cst_32 {dimension_numbers = #tpu.dot_dimension_numbers<[1], [0], [0], [1], [0, 0, 1, 1], [], []>} : vector<16x128xbf16>, vector<128x128xbf16>, vector<16x128xf32> -> vector<16x128xf32>
    %342 = arith.addf %320, %341 : vector<16x128xf32>
    %c60 = arith.constant 60 : index
    %343 = memref.load %arg1[%c60] : memref<64xf32, #tpu.memory_space<smem>>
    %344 = vector.extract_strided_slice %0 {offsets = [0, 0], sizes = [16, 128], strides = [1, 1]} : vector<16x512xf32> to vector<16x128xf32>
    %345 = vector.broadcast %343 : f32 to vector<16x128xf32>
    %346 = arith.mulf %345, %344 : vector<16x128xf32>
    %c61 = arith.constant 61 : index
    %347 = memref.load %arg1[%c61] : memref<64xf32, #tpu.memory_space<smem>>
    %348 = vector.extract_strided_slice %0 {offsets = [0, 128], sizes = [16, 128], strides = [1, 1]} : vector<16x512xf32> to vector<16x128xf32>
    %349 = vector.broadcast %347 : f32 to vector<16x128xf32>
    %350 = arith.mulf %349, %348 : vector<16x128xf32>
    %351 = arith.addf %346, %350 : vector<16x128xf32>
    %c62 = arith.constant 62 : index
    %352 = memref.load %arg1[%c62] : memref<64xf32, #tpu.memory_space<smem>>
    %353 = vector.extract_strided_slice %0 {offsets = [0, 256], sizes = [16, 128], strides = [1, 1]} : vector<16x512xf32> to vector<16x128xf32>
    %354 = vector.broadcast %352 : f32 to vector<16x128xf32>
    %355 = arith.mulf %354, %353 : vector<16x128xf32>
    %356 = arith.addf %351, %355 : vector<16x128xf32>
    %c63 = arith.constant 63 : index
    %357 = memref.load %arg1[%c63] : memref<64xf32, #tpu.memory_space<smem>>
    %358 = vector.extract_strided_slice %0 {offsets = [0, 384], sizes = [16, 128], strides = [1, 1]} : vector<16x512xf32> to vector<16x128xf32>
    %359 = vector.broadcast %357 : f32 to vector<16x128xf32>
    %360 = arith.mulf %359, %358 : vector<16x128xf32>
    %361 = arith.addf %356, %360 : vector<16x128xf32>
    %362 = arith.truncf %361 : vector<16x128xf32> to vector<16x128xbf16>
    %cst_33 = arith.constant dense<0.000000e+00> : vector<16x128xf32>
    %363 = tpu.matmul %362, %4, %cst_33 {dimension_numbers = #tpu.dot_dimension_numbers<[1], [0], [0], [1], [0, 0, 1, 1], [], []>} : vector<16x128xbf16>, vector<128x128xbf16>, vector<16x128xf32> -> vector<16x128xf32>
    %364 = arith.addf %342, %363 : vector<16x128xf32>
    %c0_34 = arith.constant 0 : index
    %c384_35 = arith.constant 384 : index
    %365 = vector.load %arg4[%c0_34, %c384_35] : memref<1x512xf32, #tpu.memory_space<vmem>>, vector<1x128xf32>
    %366 = vector.broadcast %365 : vector<1x128xf32> to vector<16x128xf32>
    %367 = arith.addf %364, %366 : vector<16x128xf32>
    %c0_36 = arith.constant 0 : index
    %c384_37 = arith.constant 384 : index
    %368 = vector.load %arg5[%c0_36, %c384_37] : memref<16x512xf32, #tpu.memory_space<vmem>>, vector<16x128xf32>
    tpu.vector_store %arg5[%c0_36, %c384_37], %367 {strides = array<i32>} : memref<16x512xf32, #tpu.memory_space<vmem>>, vector<16x128xf32>,
    return
  }
  func.func @transform_0(%arg0: i32) -> i32 {
    %c0_i32 = arith.constant 0 : i32
    %c0_i32_0 = arith.constant 0 : i32
    return %c0_i32 : i32
  }
  func.func @transform_1(%arg0: i32) -> (i32, i32) {
    %c0_i32 = arith.constant 0 : i32
    %c0_i32_0 = arith.constant 0 : i32
    %c0_i32_1 = arith.constant 0 : i32
    return %c0_i32, %c0_i32_0 : i32, i32
  }
  func.func @transform_2(%arg0: i32) -> (i32, i32) {
    %c0_i32 = arith.constant 0 : i32
    %c0_i32_0 = arith.constant 0 : i32
    return %arg0, %c0_i32 : i32, i32
  }
  func.func @transform_3(%arg0: i32) -> (i32, i32) {
    %c0_i32 = arith.constant 0 : i32
    %c0_i32_0 = arith.constant 0 : i32
    %c0_i32_1 = arith.constant 0 : i32
    return %c0_i32, %c0_i32_0 : i32, i32
  }
  func.func @transform_4(%arg0: i32) -> (i32, i32) {
    %c0_i32 = arith.constant 0 : i32
    %c0_i32_0 = arith.constant 0 : i32
    return %arg0, %c0_i32 : i32, i32
  }
}

</mosaic_0001>

<llo_original>
// kernel: ph_linear_forward.1
$region0: #{ph_linear_forward.1}
  #allocation0 [shape = 'u32[]', space=smem, size = 0x4, offset = 0x4, fixed_abs, tag = 'smem constant byte address 0x4 - core index']
  #allocation1 [shape = 'u32[72,128]{1,0:T(1,128)}', space=vmem, size = 0x9000, scoped, tag = 'internal scratch']
  %s0 = inlined_call_operand.vmem [shape: f32[64], index: 0, kind: input, shape index: {}]
  %s1 = inlined_call_operand.vmem [shape: bf16[512,128], index: 1, kind: input, shape index: {}]
  %s2 = inlined_call_operand.vmem [shape: f32[32,512], index: 2, kind: input, shape index: {}]
  %s3 = inlined_call_operand.vmem [shape: f32[1,512], index: 3, kind: input, shape index: {}]
  %s4 = inlined_call_operand.vmem [shape: f32[32,512], index: 4, kind: output, shape index: {}]
  %s5 = sld [smem:[#allocation0]]
  $region53: #{ph_linear_forward.1} parent=0
    _
  %s7 = ssub.s32 1, %s5
  %s8 = scalar_select 0, %s7, %s5
  $region1: #{ph_linear_forward.1} parent=0
    #allocation2 [shape = 'u8[512]{0}', space=smem, size = 0x200, scoped, tag = 'input window, operand 0, single buffered']
    #allocation3 [shape = 's32[2]{0}', space=sflag, size = 0x8, scoped, tag = 'scoped memory for ph_linear_forward.1']
    %9 = vsyncpa [#allocation3], 0
    loop: start=0, step=1, limit=4
    $region2: #{ph_linear_forward.1} parent=1 // loop_pre_header
      _
    $region3: #{ph_linear_forward.1} parent=1 // loop_header
      %s11 = sphi 0, %s15
      %p12 = scmp.ge.s32.totalorder %s11, 4
      %s19 = sphi 0, %s19
      %s21 = sphi 0, %s19
      %s22 = sphi 0, %s21
      %s36 = sphi 0, %s22
      %s40 = sphi 0, %s40
      %s42 = sphi 0, %s40
      %s43 = sphi 0, %s42
      %s57 = sphi 0, %s43
      %s63 = sphi 0, %s65
      %s66 = sphi 0, %s63
      %s67 = sphi 0, %s66
      %s83 = sphi 0, %s67
      %s87 = sphi 0, %s87
      %s89 = sphi 0, %s87
      %s90 = sphi 0, %s89
      %s104 = sphi 0, %s90
      %s110 = sphi 0, %s112
      %s113 = sphi 0, %s110
      %s114 = sphi 0, %s113
      %s130 = sphi 0, %s114
    $region4: #{ph_linear_forward.1} parent=1 // loop_header_branch
      %14 = sbr.rel (%p12) target = $region8
    $region5: #{ph_linear_forward.1} parent=1 // loop_body
      %s16 = ssub.s32 %s11, 1
      %s17 = ssub.s32 %s11, 2
      %s18 = sadd.s32 %s11, 1
      %s20 = sadd.s32 %s19, 1
      %p23 = scmp.eq.s32.totalorder %s11, 1
      %p24 = scmp.ne.s32.totalorder %s19, %s21
      %p25 = scmp.eq.s32.totalorder %s11, 0
      %p26 = por %p24, %p25
      %p27 = scmp.ne.s32.totalorder %s19, %s21
      %p28 = scmp.eq.s32.totalorder %s16, 1
      %p29 = por %p27, %p28
      %p30 = scmp.ne.s32.totalorder %s21, %s22
      %p31 = scmp.eq.s32.totalorder %s16, 0
      %p32 = por %p30, %p31
      %p33 = scmp.ne.s32.totalorder %s21, %s22
      %p34 = scmp.eq.s32.totalorder %s17, 1
      %p35 = por %p33, %p34
      %p37 = scmp.ne.s32.totalorder %s22, %s36
      %p38 = scmp.eq.s32.totalorder %s17, 0
      %p39 = por %p37, %p38
      %s41 = sadd.s32 %s40, 1
      %p44 = scmp.eq.s32.totalorder %s11, 1
      %p45 = scmp.ne.s32.totalorder %s40, %s42
      %p46 = scmp.eq.s32.totalorder %s11, 0
      %p47 = por %p45, %p46
      %p48 = scmp.ne.s32.totalorder %s40, %s42
      %p49 = scmp.eq.s32.totalorder %s16, 1
      %p50 = por %p48, %p49
      %p51 = scmp.ne.s32.totalorder %s42, %s43
      %p52 = scmp.eq.s32.totalorder %s16, 0
      %p53 = por %p51, %p52
      %p54 = scmp.ne.s32.totalorder %s42, %s43
      %p55 = scmp.eq.s32.totalorder %s17, 1
      %p56 = por %p54, %p55
      %p58 = scmp.ne.s32.totalorder %s43, %s57
      %p59 = scmp.eq.s32.totalorder %s17, 0
      %p60 = por %p58, %p59
      %s61 = ssub.s32 %s11, %s18
      %p62 = scmp.eq.s32.totalorder %s61, 0
      %s64 = sadd.s32 %s63, 1
      %s65 = scalar_select %p62, %s63, %s64
      %p68 = pneg %p62
      %p69 = scmp.eq.s32.totalorder %s11, 1
      %p70 = por %p68, %p69
      %p71 = scmp.ne.s32.totalorder %s63, %s66
      %p72 = scmp.eq.s32.totalorder %s11, 0
      %p73 = por %p71, %p72
      %p74 = scmp.ne.s32.totalorder %s63, %s66
      %p75 = scmp.eq.s32.totalorder %s16, 1
      %p76 = por %p74, %p75
      %p77 = scmp.ne.s32.totalorder %s66, %s67
      %p78 = scmp.eq.s32.totalorder %s16, 0
      %p79 = por %p77, %p78
      %p80 = scmp.ne.s32.totalorder %s66, %s67
      %p81 = scmp.eq.s32.totalorder %s17, 1
      %p82 = por %p80, %p81
      %p84 = scmp.ne.s32.totalorder %s67, %s83
      %p85 = scmp.eq.s32.totalorder %s17, 0
      %p86 = por %p84, %p85
      %s88 = sadd.s32 %s87, 1
      %p91 = scmp.eq.s32.totalorder %s11, 1
      %p92 = scmp.ne.s32.totalorder %s87, %s89
      %p93 = scmp.eq.s32.totalorder %s11, 0
      %p94 = por %p92, %p93
      %p95 = scmp.ne.s32.totalorder %s87, %s89
      %p96 = scmp.eq.s32.totalorder %s16, 1
      %p97 = por %p95, %p96
      %p98 = scmp.ne.s32.totalorder %s89, %s90
      %p99 = scmp.eq.s32.totalorder %s16, 0
      %p100 = por %p98, %p99
      %p101 = scmp.ne.s32.totalorder %s89, %s90
      %p102 = scmp.eq.s32.totalorder %s17, 1
      %p103 = por %p101, %p102
      %p105 = scmp.ne.s32.totalorder %s90, %s104
      %p106 = scmp.eq.s32.totalorder %s17, 0
      %p107 = por %p105, %p106
      %s108 = ssub.s32 %s11, %s18
      %p109 = scmp.eq.s32.totalorder %s108, 0
      %s111 = sadd.s32 %s110, 1
      %s112 = scalar_select %p109, %s110, %s111
      %p115 = pneg %p109
      %p116 = scmp.eq.s32.totalorder %s11, 1
      %p117 = por %p115, %p116
      %p118 = scmp.ne.s32.totalorder %s110, %s113
      %p119 = scmp.eq.s32.totalorder %s11, 0
      %p120 = por %p118, %p119
      %p121 = scmp.ne.s32.totalorder %s110, %s113
      %p122 = scmp.eq.s32.totalorder %s16, 1
      %p123 = por %p121, %p122
      %p124 = scmp.ne.s32.totalorder %s113, %s114
      %p125 = scmp.eq.s32.totalorder %s16, 0
      %p126 = por %p124, %p125
      %p127 = scmp.ne.s32.totalorder %s113, %s114
      %p128 = scmp.eq.s32.totalorder %s17, 1
      %p129 = por %p127, %p128
      %p131 = scmp.ne.s32.totalorder %s114, %s130
      %p132 = scmp.eq.s32.totalorder %s17, 0
      %p133 = por %p131, %p132
      %p134 = scmp.le.s32.totalorder 1, %s11
      %p135 = scmp.lt.s32.totalorder %s11, 3
      %p136 = pnand %p134, %p135
      %p137 = pneg %p136
      // Predicated region
      $region9: #{ph_linear_forward.1} parent=5 // pred_check
        _
      $region10: #{ph_linear_forward.1} parent=5 // pred_check_branch
        %139 = sbr.rel (%p136) target = $region12
      $region11: #{ph_linear_forward.1} parent=5 // pred_region
        %s140 = ssub.s32 %s11, 1
        // Predicated region
        $region13: #{ph_linear_forward.1} parent=11 // pred_check
          %p141 = pneg %p32
        $region14: #{ph_linear_forward.1} parent=11 // pred_check_branch
          %143 = sbr.rel (%p141) target = $region16
        $region15: #{ph_linear_forward.1} parent=11 // pred_region
          %145 = vsyncadd [#allocation3], 0
          %s147 = sshll.u32 %s0, 4
          %s148 = int_to_ptr.vmem [resolvable:$true] %s147
          %150 = dma.vmem_to_smem %s148, 16, [#allocation2], [#allocation3]
        $region16: #{ph_linear_forward.1} parent=11 // pred_fallthru
          _
        // Predicated region
        $region17: #{ph_linear_forward.1} parent=11 // pred_check
          %p151 = pneg %p53
        $region18: #{ph_linear_forward.1} parent=11 // pred_check_branch
          %153 = sbr.rel (%p151) target = $region20
        $region19: #{ph_linear_forward.1} parent=11 // pred_region
          _
        $region20: #{ph_linear_forward.1} parent=11 // pred_fallthru
          _
        // Predicated region
        $region21: #{ph_linear_forward.1} parent=11 // pred_check
          %p154 = pneg %p100
        $region22: #{ph_linear_forward.1} parent=11 // pred_check_branch
          %156 = sbr.rel (%p154) target = $region24
        $region23: #{ph_linear_forward.1} parent=11 // pred_region
          _
        $region24: #{ph_linear_forward.1} parent=11 // pred_fallthru
          _
      $region12: #{ph_linear_forward.1} parent=5 // pred_fallthru
        _
      %p157 = scmp.lt.s32.totalorder %s11, 2
      // Predicated region
      $region25: #{ph_linear_forward.1} parent=5 // pred_check
        %p158 = pneg %p157
      $region26: #{ph_linear_forward.1} parent=5 // pred_check_branch
        %160 = sbr.rel (%p158) target = $region28
      $region27: #{ph_linear_forward.1} parent=5 // pred_region
        // Predicated region
        $region29: #{ph_linear_forward.1} parent=27 // pred_check
          %p161 = pneg %p73
        $region30: #{ph_linear_forward.1} parent=27 // pred_check_branch
          %163 = sbr.rel (%p161) target = $region32
        $region31: #{ph_linear_forward.1} parent=27 // pred_region
          %s164 = smul.u32 2, %s11
          %p165 = scmp.lt.s32.totalorder %s164, 3
          %s166 = scalar_select %p165, %s164, 3
          %s167 = smul.addr %s166, 4
          %s168 = smul.addr %s167, 8
          %s169 = scalar_lea.vmem %s2, %s168
          %s170 = smul.u32 2, %s11
        $region32: #{ph_linear_forward.1} parent=27 // pred_fallthru
          _
      $region28: #{ph_linear_forward.1} parent=5 // pred_fallthru
        _
      %p171 = scmp.le.s32.totalorder 1, %s11
      %p172 = scmp.lt.s32.totalorder %s11, 3
      %p173 = pnand %p171, %p172
      %p174 = pneg %p173
      // Predicated region
      $region33: #{ph_linear_forward.1} parent=5 // pred_check
        _
      $region34: #{ph_linear_forward.1} parent=5 // pred_check_branch
        %176 = sbr.rel (%p173) target = $region36
      $region35: #{ph_linear_forward.1} parent=5 // pred_region
        %s177 = ssub.s32 %s11, 1
        // Predicated region
        $region37: #{ph_linear_forward.1} parent=35 // pred_check
          %p178 = pneg %p32
        $region38: #{ph_linear_forward.1} parent=35 // pred_check_branch
          %180 = sbr.rel (%p178) target = $region40
        $region39: #{ph_linear_forward.1} parent=35 // pred_region
          %182 = dma.done [#allocation3], 16
        $region40: #{ph_linear_forward.1} parent=35 // pred_fallthru
          _
        %183 = sfence
        %p184 = pneg %p32
        %p185 = pneg %p29
        %p186 = pneg %p53
        %p187 = pneg %p50
        %s188 = smul.u32 2, %s16
        %p189 = scmp.lt.s32.totalorder %s188, 3
        %s190 = scalar_select %p189, %s188, 3
        %s191 = smul.addr %s190, 4
        %s192 = smul.addr %s191, 8
        %s193 = scalar_lea.vmem %s2, %s192
        %p194 = pneg %p79
        %p195 = pneg %p76
        %p196 = pneg %p100
        %p197 = pneg %p97
        %p198 = pneg %p126
        %p199 = pneg %p123
        %s200 = smul.u32 2, %s16
        %p201 = scmp.lt.s32.totalorder %s200, 3
        %s202 = scalar_select %p201, %s200, 3
        %s203 = smul.addr %s202, 4
        %s204 = smul.addr %s203, 8
        %s205 = scalar_lea.vmem %s4, %s204
        %s206 = smul.u32 2, %s16
        %p207 = scmp.lt.s32.totalorder %s206, 3
        %s208 = scalar_select %p207, %s206, 3
        %s209 = smul.addr %s208, 4
        %s210 = smul.addr %s209, 8
        %s211 = scalar_lea.vmem %s2, %s210
        %s212 = smul.u32 2, %s16
        %s213 = smul.u32 2, %s16
        %p214 = scmp.lt.s32.totalorder %s213, 3
        %s215 = scalar_select %p214, %s213, 3
        %s216 = smul.addr %s215, 4
        %s217 = smul.addr %s216, 8
        %s218 = scalar_lea.vmem %s4, %s217
        %s219 = smul.u32 2, %s16
        %v220 = vld [vmem:[%s211] sm:$0xff]
        %v221 = vld [vmem:[%s211 + $0x8] sm:$0xff]
        %v222 = vld [vmem:[%s211 + $0x10] sm:$0xff]
        %v223 = vld [vmem:[%s211 + $0x18] sm:$0xff]
        %v224 = vld [vmem:[%s211 + $0x20] sm:$0xff]
        %v225 = vld [vmem:[%s211 + $0x28] sm:$0xff]
        %v226 = vld [vmem:[%s211 + $0x30] sm:$0xff]
        %v227 = vld [vmem:[%s211 + $0x38] sm:$0xff]
        %v228 = vld [vmem:[%s1] sm:$0xf]
        %v229 = vld [vmem:[%s1 + $0x4] sm:$0xf]
        %v230 = vld [vmem:[%s1 + $0x8] sm:$0xf]
        %v231 = vld [vmem:[%s1 + $0xc] sm:$0xf]
        %v232 = vld [vmem:[%s1 + $0x10] sm:$0xf]
        %v233 = vld [vmem:[%s1 + $0x14] sm:$0xf]
        %v234 = vld [vmem:[%s1 + $0x18] sm:$0xf]
        %v235 = vld [vmem:[%s1 + $0x1c] sm:$0xf]
        %v236 = vld [vmem:[%s1 + $0x20] sm:$0xf]
        %v237 = vld [vmem:[%s1 + $0x24] sm:$0xf]
        %v238 = vld [vmem:[%s1 + $0x28] sm:$0xf]
        %v239 = vld [vmem:[%s1 + $0x2c] sm:$0xf]
        %v240 = vld [vmem:[%s1 + $0x30] sm:$0xf]
        %v241 = vld [vmem:[%s1 + $0x34] sm:$0xf]
        %v242 = vld [vmem:[%s1 + $0x38] sm:$0xf]
        %v243 = vld [vmem:[%s1 + $0x3c] sm:$0xf]
        %v244 = vld [vmem:[%s1 + $0x40] sm:$0xf]
        %v245 = vld [vmem:[%s1 + $0x44] sm:$0xf]
        %v246 = vld [vmem:[%s1 + $0x48] sm:$0xf]
        %v247 = vld [vmem:[%s1 + $0x4c] sm:$0xf]
        %v248 = vld [vmem:[%s1 + $0x50] sm:$0xf]
        %v249 = vld [vmem:[%s1 + $0x54] sm:$0xf]
        %v250 = vld [vmem:[%s1 + $0x58] sm:$0xf]
        %v251 = vld [vmem:[%s1 + $0x5c] sm:$0xf]
        %v252 = vld [vmem:[%s1 + $0x60] sm:$0xf]
        %v253 = vld [vmem:[%s1 + $0x64] sm:$0xf]
        %v254 = vld [vmem:[%s1 + $0x68] sm:$0xf]
        %v255 = vld [vmem:[%s1 + $0x6c] sm:$0xf]
        %v256 = vld [vmem:[%s1 + $0x70] sm:$0xf]
        %v257 = vld [vmem:[%s1 + $0x74] sm:$0xf]
        %v258 = vld [vmem:[%s1 + $0x78] sm:$0xf]
        %v259 = vld [vmem:[%s1 + $0x7c] sm:$0xf]
        %v260 = vld [vmem:[%s1 + $0x80] sm:$0xf]
        %v261 = vld [vmem:[%s1 + $0x84] sm:$0xf]
        %v262 = vld [vmem:[%s1 + $0x88] sm:$0xf]
        %v263 = vld [vmem:[%s1 + $0x8c] sm:$0xf]
        %v264 = vld [vmem:[%s1 + $0x90] sm:$0xf]
        %v265 = vld [vmem:[%s1 + $0x94] sm:$0xf]
        %v266 = vld [vmem:[%s1 + $0x98] sm:$0xf]
        %v267 = vld [vmem:[%s1 + $0x9c] sm:$0xf]
        %v268 = vld [vmem:[%s1 + $0xa0] sm:$0xf]
        %v269 = vld [vmem:[%s1 + $0xa4] sm:$0xf]
        %v270 = vld [vmem:[%s1 + $0xa8] sm:$0xf]
        %v271 = vld [vmem:[%s1 + $0xac] sm:$0xf]
        %v272 = vld [vmem:[%s1 + $0xb0] sm:$0xf]
        %v273 = vld [vmem:[%s1 + $0xb4] sm:$0xf]
        %v274 = vld [vmem:[%s1 + $0xb8] sm:$0xf]
        %v275 = vld [vmem:[%s1 + $0xbc] sm:$0xf]
        %v276 = vld [vmem:[%s1 + $0xc0] sm:$0xf]
        %v277 = vld [vmem:[%s1 + $0xc4] sm:$0xf]
        %v278 = vld [vmem:[%s1 + $0xc8] sm:$0xf]
        %v279 = vld [vmem:[%s1 + $0xcc] sm:$0xf]
        %v280 = vld [vmem:[%s1 + $0xd0] sm:$0xf]
        %v281 = vld [vmem:[%s1 + $0xd4] sm:$0xf]
        %v282 = vld [vmem:[%s1 + $0xd8] sm:$0xf]
        %v283 = vld [vmem:[%s1 + $0xdc] sm:$0xf]
        %v284 = vld [vmem:[%s1 + $0xe0] sm:$0xf]
        %v285 = vld [vmem:[%s1 + $0xe4] sm:$0xf]
        %v286 = vld [vmem:[%s1 + $0xe8] sm:$0xf]
        %v287 = vld [vmem:[%s1 + $0xec] sm:$0xf]
        %v288 = vld [vmem:[%s1 + $0xf0] sm:$0xf]
        %v289 = vld [vmem:[%s1 + $0xf4] sm:$0xf]
        %v290 = vld [vmem:[%s1 + $0xf8] sm:$0xf]
        %v291 = vld [vmem:[%s1 + $0xfc] sm:$0xf]
        %s292 = sld [smem:[#allocation2]]
        %v293 = vstv %s292
        %v294 = vmul.f32 %v293, %v220
        %v295 = vmul.f32 %v293, %v224
        %s296 = sld [smem:[#allocation2 + $0x1]]
        %v297 = vstv %s296
        %v298 = vmul.f32 %v297, %v221
        %v299 = vmul.f32 %v297, %v225
        %v300 = vadd.f32 %v294, %v298
        %v301 = vadd.f32 %v295, %v299
        %s302 = sld [smem:[#allocation2 + $0x2]]
        %v303 = vstv %s302
        %v304 = vmul.f32 %v303, %v222
        %v305 = vmul.f32 %v303, %v226
        %v306 = vadd.f32 %v300, %v304
        %v307 = vadd.f32 %v301, %v305
        %s308 = sld [smem:[#allocation2 + $0x3]]
        %v309 = vstv %s308
        %v310 = vmul.f32 %v309, %v223
        %v311 = vmul.f32 %v309, %v227
        %v312 = vadd.f32 %v306, %v310
        %v313 = vadd.f32 %v307, %v311
        %v314 = vpack.c.bf16 %v313, %v312
        %s315 = sld [smem:[#allocation2 + $0x10]]
        %v316 = vstv %s315
        %v317 = vmul.f32 %v316, %v220
        %v318 = vmul.f32 %v316, %v224
        %s319 = sld [smem:[#allocation2 + $0x11]]
        %v320 = vstv %s319
        %v321 = vmul.f32 %v320, %v221
        %v322 = vmul.f32 %v320, %v225
        %v323 = vadd.f32 %v317, %v321
        %v324 = vadd.f32 %v318, %v322
        %s325 = sld [smem:[#allocation2 + $0x12]]
        %v326 = vstv %s325
        %v327 = vmul.f32 %v326, %v222
        %v328 = vmul.f32 %v326, %v226
        %v329 = vadd.f32 %v323, %v327
        %v330 = vadd.f32 %v324, %v328
        %s331 = sld [smem:[#allocation2 + $0x13]]
        %v332 = vstv %s331
        %v333 = vmul.f32 %v332, %v223
        %v334 = vmul.f32 %v332, %v227
        %v335 = vadd.f32 %v329, %v333
        %v336 = vadd.f32 %v330, %v334
        %v337 = vpack.c.bf16 %v336, %v335
        %v354 = vunpack.c.l.b16 %v244
        %v355 = vunpack.c.l.b16 %v245
        %v356 = vunpack.c.l.b16 %v246
        %v357 = vunpack.c.l.b16 %v247
        %v358 = vunpack.c.l.b16 %v248
        %v359 = vunpack.c.l.b16 %v249
        %v360 = vunpack.c.l.b16 %v250
        %v361 = vunpack.c.l.b16 %v251
        %v362 = vunpack.c.l.b16 %v252
        %v363 = vunpack.c.l.b16 %v253
        %v364 = vunpack.c.l.b16 %v254
        %v365 = vunpack.c.l.b16 %v255
        %v366 = vunpack.c.l.b16 %v256
        %v367 = vunpack.c.l.b16 %v257
        %v368 = vunpack.c.l.b16 %v258
        %v369 = vunpack.c.l.b16 %v259
        %v370 = vpack.c.b16 %v355, %v354
        %v371 = vpack.c.b16 %v357, %v356
        %v372 = vpack.c.b16 %v359, %v358
        %v373 = vpack.c.b16 %v361, %v360
        %v374 = vpack.c.b16 %v363, %v362
        %v375 = vpack.c.b16 %v365, %v364
        %v376 = vpack.c.b16 %v367, %v366
        %v377 = vpack.c.b16 %v369, %v368
        %386 = vmatpush.bf16.msra.mxu0 %v377
        %387 = vmatpush.bf16.msra.mxu0 %v376
        %388 = vmatpush.bf16.msra.mxu0 %v375
        %389 = vmatpush.bf16.msra.mxu0 %v374
        %390 = vmatpush.bf16.msra.mxu0 %v373
        %391 = vmatpush.bf16.msra.mxu0 %v372
        %392 = vmatpush.bf16.msra.mxu0 %v371
        %393 = vmatpush.bf16.msra.mxu0 %v370
        %394 = vmatmul.bf16.gmra.mxu0 %v337
        %v395 = vpop.f32.mrf.mxu0
        %v396 = vadd.f32 0.0, %v395
        %v397 = vpop.f32.mrf.mxu0
        %v398 = vadd.f32 0.0, %v397
        %399 = vdwg.mxu0
        %v416 = vunpack.c.l.b16 %v228
        %v417 = vunpack.c.l.b16 %v229
        %v418 = vunpack.c.l.b16 %v230
        %v419 = vunpack.c.l.b16 %v231
        %v420 = vunpack.c.l.b16 %v232
        %v421 = vunpack.c.l.b16 %v233
        %v422 = vunpack.c.l.b16 %v234
        %v423 = vunpack.c.l.b16 %v235
        %v424 = vunpack.c.l.b16 %v236
        %v425 = vunpack.c.l.b16 %v237
        %v426 = vunpack.c.l.b16 %v238
        %v427 = vunpack.c.l.b16 %v239
        %v428 = vunpack.c.l.b16 %v240
        %v429 = vunpack.c.l.b16 %v241
        %v430 = vunpack.c.l.b16 %v242
        %v431 = vunpack.c.l.b16 %v243
        %v432 = vpack.c.b16 %v417, %v416
        %v433 = vpack.c.b16 %v419, %v418
        %v434 = vpack.c.b16 %v421, %v420
        %v435 = vpack.c.b16 %v423, %v422
        %v436 = vpack.c.b16 %v425, %v424
        %v437 = vpack.c.b16 %v427, %v426
        %v438 = vpack.c.b16 %v429, %v428
        %v439 = vpack.c.b16 %v431, %v430
        %448 = vmatpush.bf16.msra.mxu0 %v439
        %449 = vmatpush.bf16.msra.mxu0 %v438
        %450 = vmatpush.bf16.msra.mxu0 %v437
        %451 = vmatpush.bf16.msra.mxu0 %v436
        %452 = vmatpush.bf16.msra.mxu0 %v435
        %453 = vmatpush.bf16.msra.mxu0 %v434
        %454 = vmatpush.bf16.msra.mxu0 %v433
        %455 = vmatpush.bf16.msra.mxu0 %v432
        %456 = vmatmul.bf16.gmra.mxu0 %v314
        %v457 = vpop.f32.mrf.mxu0
        %v458 = vadd.f32 %v396, %v457
        %v459 = vpop.f32.mrf.mxu0
        %v460 = vadd.f32 %v398, %v459
        %461 = vdwg.mxu0
        %s462 = sld [smem:[#allocation2 + $0x20]]
        %v463 = vstv %s462
        %v464 = vmul.f32 %v463, %v220
        %v465 = vmul.f32 %v463, %v224
        %s466 = sld [smem:[#allocation2 + $0x21]]
        %v467 = vstv %s466
        %v468 = vmul.f32 %v467, %v221
        %v469 = vmul.f32 %v467, %v225
        %v470 = vadd.f32 %v464, %v468
        %v471 = vadd.f32 %v465, %v469
        %s472 = sld [smem:[#allocation2 + $0x22]]
        %v473 = vstv %s472
        %v474 = vmul.f32 %v473, %v222
        %v475 = vmul.f32 %v473, %v226
        %v476 = vadd.f32 %v470, %v474
        %v477 = vadd.f32 %v471, %v475
        %s478 = sld [smem:[#allocation2 + $0x23]]
        %v479 = vstv %s478
        %v480 = vmul.f32 %v479, %v223
        %v481 = vmul.f32 %v479, %v227
        %v482 = vadd.f32 %v476, %v480
        %v483 = vadd.f32 %v477, %v481
        %v484 = vpack.c.bf16 %v483, %v482
        %v501 = vunpack.c.l.b16 %v260
        %v502 = vunpack.c.l.b16 %v261
        %v503 = vunpack.c.l.b16 %v262
        %v504 = vunpack.c.l.b16 %v263
        %v505 = vunpack.c.l.b16 %v264
        %v506 = vunpack.c.l.b16 %v265
        %v507 = vunpack.c.l.b16 %v266
        %v508 = vunpack.c.l.b16 %v267
        %v509 = vunpack.c.l.b16 %v268
        %v510 = vunpack.c.l.b16 %v269
        %v511 = vunpack.c.l.b16 %v270
        %v512 = vunpack.c.l.b16 %v271
        %v513 = vunpack.c.l.b16 %v272
        %v514 = vunpack.c.l.b16 %v273
        %v515 = vunpack.c.l.b16 %v274
        %v516 = vunpack.c.l.b16 %v275
        %v517 = vpack.c.b16 %v502, %v501
        %v518 = vpack.c.b16 %v504, %v503
        %v519 = vpack.c.b16 %v506, %v505
        %v520 = vpack.c.b16 %v508, %v507
        %v521 = vpack.c.b16 %v510, %v509
        %v522 = vpack.c.b16 %v512, %v511
        %v523 = vpack.c.b16 %v514, %v513
        %v524 = vpack.c.b16 %v516, %v515
        %533 = vmatpush.bf16.msra.mxu0 %v524
        %534 = vmatpush.bf16.msra.mxu0 %v523
        %535 = vmatpush.bf16.msra.mxu0 %v522
        %536 = vmatpush.bf16.msra.mxu0 %v521
        %537 = vmatpush.bf16.msra.mxu0 %v520
        %538 = vmatpush.bf16.msra.mxu0 %v519
        %539 = vmatpush.bf16.msra.mxu0 %v518
        %540 = vmatpush.bf16.msra.mxu0 %v517
        %541 = vmatmul.bf16.gmra.mxu0 %v484
        %v542 = vpop.f32.mrf.mxu0
        %v543 = vadd.f32 0.0, %v542
        %v544 = vpop.f32.mrf.mxu0
        %v545 = vadd.f32 0.0, %v544
        %546 = vdwg.mxu0
        %v547 = vadd.f32 %v458, %v543
        %v548 = vadd.f32 %v460, %v545
        %s549 = sld [smem:[#allocation2 + $0x30]]
        %v550 = vstv %s549
        %v551 = vmul.f32 %v550, %v220
        %v552 = vmul.f32 %v550, %v224
        %s553 = sld [smem:[#allocation2 + $0x31]]
        %v554 = vstv %s553
        %v555 = vmul.f32 %v554, %v221
        %v556 = vmul.f32 %v554, %v225
        %v557 = vadd.f32 %v551, %v555
        %v558 = vadd.f32 %v552, %v556
        %s559 = sld [smem:[#allocation2 + $0x32]]
        %v560 = vstv %s559
        %v561 = vmul.f32 %v560, %v222
        %v562 = vmul.f32 %v560, %v226
        %v563 = vadd.f32 %v557, %v561
        %v564 = vadd.f32 %v558, %v562
        %s565 = sld [smem:[#allocation2 + $0x33]]
        %v566 = vstv %s565
        %v567 = vmul.f32 %v566, %v223
        %v568 = vmul.f32 %v566, %v227
        %v569 = vadd.f32 %v563, %v567
        %v570 = vadd.f32 %v564, %v568
        %v571 = vpack.c.bf16 %v570, %v569
        %v588 = vunpack.c.l.b16 %v276
        %v589 = vunpack.c.l.b16 %v277
        %v590 = vunpack.c.l.b16 %v278
        %v591 = vunpack.c.l.b16 %v279
        %v592 = vunpack.c.l.b16 %v280
        %v593 = vunpack.c.l.b16 %v281
        %v594 = vunpack.c.l.b16 %v282
        %v595 = vunpack.c.l.b16 %v283
        %v596 = vunpack.c.l.b16 %v284
        %v597 = vunpack.c.l.b16 %v285
        %v598 = vunpack.c.l.b16 %v286
        %v599 = vunpack.c.l.b16 %v287
        %v600 = vunpack.c.l.b16 %v288
        %v601 = vunpack.c.l.b16 %v289
        %v602 = vunpack.c.l.b16 %v290
        %v603 = vunpack.c.l.b16 %v291
        %v604 = vpack.c.b16 %v589, %v588
        %v605 = vpack.c.b16 %v591, %v590
        %v606 = vpack.c.b16 %v593, %v592
        %v607 = vpack.c.b16 %v595, %v594
        %v608 = vpack.c.b16 %v597, %v596
        %v609 = vpack.c.b16 %v599, %v598
        %v610 = vpack.c.b16 %v601, %v600
        %v611 = vpack.c.b16 %v603, %v602
        %620 = vmatpush.bf16.msra.mxu0 %v611
        %621 = vmatpush.bf16.msra.mxu0 %v610
        %622 = vmatpush.bf16.msra.mxu0 %v609
        %623 = vmatpush.bf16.msra.mxu0 %v608
        %624 = vmatpush.bf16.msra.mxu0 %v607
        %625 = vmatpush.bf16.msra.mxu0 %v606
        %626 = vmatpush.bf16.msra.mxu0 %v605
        %627 = vmatpush.bf16.msra.mxu0 %v604
        %628 = vmatmul.bf16.gmra.mxu0 %v571
        %v629 = vpop.f32.mrf.mxu0
        %v630 = vadd.f32 0.0, %v629
        %v631 = vpop.f32.mrf.mxu0
        %v632 = vadd.f32 0.0, %v631
        %633 = vdwg.mxu0
        %v634 = vadd.f32 %v547, %v630
        %v635 = vadd.f32 %v548, %v632
        %v636 = vld [vmem:[%s3] sm:$0x1]
        %v638 = vperm.slane %v636, 0
        %v640 = vadd.f32 %v634, %v638
        %v641 = vadd.f32 %v635, %v638
        %642 = vst [vmem:[%s218] sm:$0xff] %v640
        %643 = vst [vmem:[%s218 + $0x20] sm:$0xff] %v641
        %s644 = sld [smem:[#allocation2 + $0x4]]
        %v645 = vstv %s644
        %v646 = vmul.f32 %v645, %v220
        %v647 = vmul.f32 %v645, %v224
        %s648 = sld [smem:[#allocation2 + $0x5]]
        %v649 = vstv %s648
        %v650 = vmul.f32 %v649, %v221
        %v651 = vmul.f32 %v649, %v225
        %v652 = vadd.f32 %v646, %v650
        %v653 = vadd.f32 %v647, %v651
        %s654 = sld [smem:[#allocation2 + $0x6]]
        %v655 = vstv %s654
        %v656 = vmul.f32 %v655, %v222
        %v657 = vmul.f32 %v655, %v226
        %v658 = vadd.f32 %v652, %v656
        %v659 = vadd.f32 %v653, %v657
        %s660 = sld [smem:[#allocation2 + $0x7]]
        %v661 = vstv %s660
        %v662 = vmul.f32 %v661, %v223
        %v663 = vmul.f32 %v661, %v227
        %v664 = vadd.f32 %v658, %v662
        %v665 = vadd.f32 %v659, %v663
        %v666 = vpack.c.bf16 %v665, %v664
        %s667 = sld [smem:[#allocation2 + $0x14]]
        %v668 = vstv %s667
        %v669 = vmul.f32 %v668, %v220
        %v670 = vmul.f32 %v668, %v224
        %s671 = sld [smem:[#allocation2 + $0x15]]
        %v672 = vstv %s671
        %v673 = vmul.f32 %v672, %v221
        %v674 = vmul.f32 %v672, %v225
        %v675 = vadd.f32 %v669, %v673
        %v676 = vadd.f32 %v670, %v674
        %s677 = sld [smem:[#allocation2 + $0x16]]
        %v678 = vstv %s677
        %v679 = vmul.f32 %v678, %v222
        %v680 = vmul.f32 %v678, %v226
        %v681 = vadd.f32 %v675, %v679
        %v682 = vadd.f32 %v676, %v680
        %s683 = sld [smem:[#allocation2 + $0x17]]
        %v684 = vstv %s683
        %v685 = vmul.f32 %v684, %v223
        %v686 = vmul.f32 %v684, %v227
        %v687 = vadd.f32 %v681, %v685
        %v688 = vadd.f32 %v682, %v686
        %v689 = vpack.c.bf16 %v688, %v687
        %690 = vmatpush.bf16.msra.mxu0 %v377
        %691 = vmatpush.bf16.msra.mxu0 %v376
        %692 = vmatpush.bf16.msra.mxu0 %v375
        %693 = vmatpush.bf16.msra.mxu0 %v374
        %694 = vmatpush.bf16.msra.mxu0 %v373
        %695 = vmatpush.bf16.msra.mxu0 %v372
        %696 = vmatpush.bf16.msra.mxu0 %v371
        %697 = vmatpush.bf16.msra.mxu0 %v370
        %698 = vmatmul.bf16.gmra.mxu0 %v689
        %v699 = vpop.f32.mrf.mxu0
        %v700 = vadd.f32 0.0, %v699
        %v701 = vpop.f32.mrf.mxu0
        %v702 = vadd.f32 0.0, %v701
        %703 = vdwg.mxu0
        %704 = vmatpush.bf16.msra.mxu0 %v439
        %705 = vmatpush.bf16.msra.mxu0 %v438
        %706 = vmatpush.bf16.msra.mxu0 %v437
        %707 = vmatpush.bf16.msra.mxu0 %v436
        %708 = vmatpush.bf16.msra.mxu0 %v435
        %709 = vmatpush.bf16.msra.mxu0 %v434
        %710 = vmatpush.bf16.msra.mxu0 %v433
        %711 = vmatpush.bf16.msra.mxu0 %v432
        %712 = vmatmul.bf16.gmra.mxu0 %v666
        %v713 = vpop.f32.mrf.mxu0
        %v714 = vadd.f32 %v700, %v713
        %v715 = vpop.f32.mrf.mxu0
        %v716 = vadd.f32 %v702, %v715
        %717 = vdwg.mxu0
        %s718 = sld [smem:[#allocation2 + $0x24]]
        %v719 = vstv %s718
        %v720 = vmul.f32 %v719, %v220
        %v721 = vmul.f32 %v719, %v224
        %s722 = sld [smem:[#allocation2 + $0x25]]
        %v723 = vstv %s722
        %v724 = vmul.f32 %v723, %v221
        %v725 = vmul.f32 %v723, %v225
        %v726 = vadd.f32 %v720, %v724
        %v727 = vadd.f32 %v721, %v725
        %s728 = sld [smem:[#allocation2 + $0x26]]
        %v729 = vstv %s728
        %v730 = vmul.f32 %v729, %v222
        %v731 = vmul.f32 %v729, %v226
        %v732 = vadd.f32 %v726, %v730
        %v733 = vadd.f32 %v727, %v731
        %s734 = sld [smem:[#allocation2 + $0x27]]
        %v735 = vstv %s734
        %v736 = vmul.f32 %v735, %v223
        %v737 = vmul.f32 %v735, %v227
        %v738 = vadd.f32 %v732, %v736
        %v739 = vadd.f32 %v733, %v737
        %v740 = vpack.c.bf16 %v739, %v738
        %741 = vmatpush.bf16.msra.mxu0 %v524
        %742 = vmatpush.bf16.msra.mxu0 %v523
        %743 = vmatpush.bf16.msra.mxu0 %v522
        %744 = vmatpush.bf16.msra.mxu0 %v521
        %745 = vmatpush.bf16.msra.mxu0 %v520
        %746 = vmatpush.bf16.msra.mxu0 %v519
        %747 = vmatpush.bf16.msra.mxu0 %v518
        %748 = vmatpush.bf16.msra.mxu0 %v517
        %749 = vmatmul.bf16.gmra.mxu0 %v740
        %v750 = vpop.f32.mrf.mxu0
        %v751 = vadd.f32 0.0, %v750
        %v752 = vpop.f32.mrf.mxu0
        %v753 = vadd.f32 0.0, %v752
        %754 = vdwg.mxu0
        %v755 = vadd.f32 %v714, %v751
        %v756 = vadd.f32 %v716, %v753
        %s757 = sld [smem:[#allocation2 + $0x34]]
        %v758 = vstv %s757
        %v759 = vmul.f32 %v758, %v220
        %v760 = vmul.f32 %v758, %v224
        %s761 = sld [smem:[#allocation2 + $0x35]]
        %v762 = vstv %s761
        %v763 = vmul.f32 %v762, %v221
        %v764 = vmul.f32 %v762, %v225
        %v765 = vadd.f32 %v759, %v763
        %v766 = vadd.f32 %v760, %v764
        %s767 = sld [smem:[#allocation2 + $0x36]]
        %v768 = vstv %s767
        %v769 = vmul.f32 %v768, %v222
        %v770 = vmul.f32 %v768, %v226
        %v771 = vadd.f32 %v765, %v769
        %v772 = vadd.f32 %v766, %v770
        %s773 = sld [smem:[#allocation2 + $0x37]]
        %v774 = vstv %s773
        %v775 = vmul.f32 %v774, %v223
        %v776 = vmul.f32 %v774, %v227
        %v777 = vadd.f32 %v771, %v775
        %v778 = vadd.f32 %v772, %v776
        %v779 = vpack.c.bf16 %v778, %v777
        %780 = vmatpush.bf16.msra.mxu0 %v611
        %781 = vmatpush.bf16.msra.mxu0 %v610
        %782 = vmatpush.bf16.msra.mxu0 %v609
        %783 = vmatpush.bf16.msra.mxu0 %v608
        %784 = vmatpush.bf16.msra.mxu0 %v607
        %785 = vmatpush.bf16.msra.mxu0 %v606
        %786 = vmatpush.bf16.msra.mxu0 %v605
        %787 = vmatpush.bf16.msra.mxu0 %v604
        %788 = vmatmul.bf16.gmra.mxu0 %v779
        %v789 = vpop.f32.mrf.mxu0
        %v790 = vadd.f32 0.0, %v789
        %v791 = vpop.f32.mrf.mxu0
        %v792 = vadd.f32 0.0, %v791
        %793 = vdwg.mxu0
        %v794 = vadd.f32 %v755, %v790
        %v795 = vadd.f32 %v756, %v792
        %v796 = vld [vmem:[%s3 + $0x1] sm:$0x1]
        %v798 = vperm.slane %v796, 0
        %v800 = vadd.f32 %v794, %v798
        %v801 = vadd.f32 %v795, %v798
        %802 = vst [vmem:[%s218 + $0x8] sm:$0xff] %v800
        %803 = vst [vmem:[%s218 + $0x28] sm:$0xff] %v801
        %s804 = sld [smem:[#allocation2 + $0x8]]
        %v805 = vstv %s804
        %v806 = vmul.f32 %v805, %v220
        %v807 = vmul.f32 %v805, %v224
        %s808 = sld [smem:[#allocation2 + $0x9]]
        %v809 = vstv %s808
        %v810 = vmul.f32 %v809, %v221
        %v811 = vmul.f32 %v809, %v225
        %v812 = vadd.f32 %v806, %v810
        %v813 = vadd.f32 %v807, %v811
        %s814 = sld [smem:[#allocation2 + $0xa]]
        %v815 = vstv %s814
        %v816 = vmul.f32 %v815, %v222
        %v817 = vmul.f32 %v815, %v226
        %v818 = vadd.f32 %v812, %v816
        %v819 = vadd.f32 %v813, %v817
        %s820 = sld [smem:[#allocation2 + $0xb]]
        %v821 = vstv %s820
        %v822 = vmul.f32 %v821, %v223
        %v823 = vmul.f32 %v821, %v227
        %v824 = vadd.f32 %v818, %v822
        %v825 = vadd.f32 %v819, %v823
        %v826 = vpack.c.bf16 %v825, %v824
        %s827 = sld [smem:[#allocation2 + $0x18]]
        %v828 = vstv %s827
        %v829 = vmul.f32 %v828, %v220
        %v830 = vmul.f32 %v828, %v224
        %s831 = sld [smem:[#allocation2 + $0x19]]
        %v832 = vstv %s831
        %v833 = vmul.f32 %v832, %v221
        %v834 = vmul.f32 %v832, %v225
        %v835 = vadd.f32 %v829, %v833
        %v836 = vadd.f32 %v830, %v834
        %s837 = sld [smem:[#allocation2 + $0x1a]]
        %v838 = vstv %s837
        %v839 = vmul.f32 %v838, %v222
        %v840 = vmul.f32 %v838, %v226
        %v841 = vadd.f32 %v835, %v839
        %v842 = vadd.f32 %v836, %v840
        %s843 = sld [smem:[#allocation2 + $0x1b]]
        %v844 = vstv %s843
        %v845 = vmul.f32 %v844, %v223
        %v846 = vmul.f32 %v844, %v227
        %v847 = vadd.f32 %v841, %v845
        %v848 = vadd.f32 %v842, %v846
        %v849 = vpack.c.bf16 %v848, %v847
        %850 = vmatpush.bf16.msra.mxu0 %v377
        %851 = vmatpush.bf16.msra.mxu0 %v376
        %852 = vmatpush.bf16.msra.mxu0 %v375
        %853 = vmatpush.bf16.msra.mxu0 %v374
        %854 = vmatpush.bf16.msra.mxu0 %v373
        %855 = vmatpush.bf16.msra.mxu0 %v372
        %856 = vmatpush.bf16.msra.mxu0 %v371
        %857 = vmatpush.bf16.msra.mxu0 %v370
        %858 = vmatmul.bf16.gmra.mxu0 %v849
        %v859 = vpop.f32.mrf.mxu0
        %v860 = vadd.f32 0.0, %v859
        %v861 = vpop.f32.mrf.mxu0
        %v862 = vadd.f32 0.0, %v861
        %863 = vdwg.mxu0
        %864 = vmatpush.bf16.msra.mxu0 %v439
        %865 = vmatpush.bf16.msra.mxu0 %v438
        %866 = vmatpush.bf16.msra.mxu0 %v437
        %867 = vmatpush.bf16.msra.mxu0 %v436
        %868 = vmatpush.bf16.msra.mxu0 %v435
        %869 = vmatpush.bf16.msra.mxu0 %v434
        %870 = vmatpush.bf16.msra.mxu0 %v433
        %871 = vmatpush.bf16.msra.mxu0 %v432
        %872 = vmatmul.bf16.gmra.mxu0 %v826
        %v873 = vpop.f32.mrf.mxu0
        %v874 = vadd.f32 %v860, %v873
        %v875 = vpop.f32.mrf.mxu0
        %v876 = vadd.f32 %v862, %v875
        %877 = vdwg.mxu0
        %s878 = sld [smem:[#allocation2 + $0x28]]
        %v879 = vstv %s878
        %v880 = vmul.f32 %v879, %v220
        %v881 = vmul.f32 %v879, %v224
        %s882 = sld [smem:[#allocation2 + $0x29]]
        %v883 = vstv %s882
        %v884 = vmul.f32 %v883, %v221
        %v885 = vmul.f32 %v883, %v225
        %v886 = vadd.f32 %v880, %v884
        %v887 = vadd.f32 %v881, %v885
        %s888 = sld [smem:[#allocation2 + $0x2a]]
        %v889 = vstv %s888
        %v890 = vmul.f32 %v889, %v222
        %v891 = vmul.f32 %v889, %v226
        %v892 = vadd.f32 %v886, %v890
        %v893 = vadd.f32 %v887, %v891
        %s894 = sld [smem:[#allocation2 + $0x2b]]
        %v895 = vstv %s894
        %v896 = vmul.f32 %v895, %v223
        %v897 = vmul.f32 %v895, %v227
        %v898 = vadd.f32 %v892, %v896
        %v899 = vadd.f32 %v893, %v897
        %v900 = vpack.c.bf16 %v899, %v898
        %901 = vmatpush.bf16.msra.mxu0 %v524
        %902 = vmatpush.bf16.msra.mxu0 %v523
        %903 = vmatpush.bf16.msra.mxu0 %v522
        %904 = vmatpush.bf16.msra.mxu0 %v521
        %905 = vmatpush.bf16.msra.mxu0 %v520
        %906 = vmatpush.bf16.msra.mxu0 %v519
        %907 = vmatpush.bf16.msra.mxu0 %v518
        %908 = vmatpush.bf16.msra.mxu0 %v517
        %909 = vmatmul.bf16.gmra.mxu0 %v900
        %v910 = vpop.f32.mrf.mxu0
        %v911 = vadd.f32 0.0, %v910
        %v912 = vpop.f32.mrf.mxu0
        %v913 = vadd.f32 0.0, %v912
        %914 = vdwg.mxu0
        %v915 = vadd.f32 %v874, %v911
        %v916 = vadd.f32 %v876, %v913
        %s917 = sld [smem:[#allocation2 + $0x38]]
        %v918 = vstv %s917
        %v919 = vmul.f32 %v918, %v220
        %v920 = vmul.f32 %v918, %v224
        %s921 = sld [smem:[#allocation2 + $0x39]]
        %v922 = vstv %s921
        %v923 = vmul.f32 %v922, %v221
        %v924 = vmul.f32 %v922, %v225
        %v925 = vadd.f32 %v919, %v923
        %v926 = vadd.f32 %v920, %v924
        %s927 = sld [smem:[#allocation2 + $0x3a]]
        %v928 = vstv %s927
        %v929 = vmul.f32 %v928, %v222
        %v930 = vmul.f32 %v928, %v226
        %v931 = vadd.f32 %v925, %v929
        %v932 = vadd.f32 %v926, %v930
        %s933 = sld [smem:[#allocation2 + $0x3b]]
        %v934 = vstv %s933
        %v935 = vmul.f32 %v934, %v223
        %v936 = vmul.f32 %v934, %v227
        %v937 = vadd.f32 %v931, %v935
        %v938 = vadd.f32 %v932, %v936
        %v939 = vpack.c.bf16 %v938, %v937
        %940 = vmatpush.bf16.msra.mxu0 %v611
        %941 = vmatpush.bf16.msra.mxu0 %v610
        %942 = vmatpush.bf16.msra.mxu0 %v609
        %943 = vmatpush.bf16.msra.mxu0 %v608
        %944 = vmatpush.bf16.msra.mxu0 %v607
        %945 = vmatpush.bf16.msra.mxu0 %v606
        %946 = vmatpush.bf16.msra.mxu0 %v605
        %947 = vmatpush.bf16.msra.mxu0 %v604
        %948 = vmatmul.bf16.gmra.mxu0 %v939
        %v949 = vpop.f32.mrf.mxu0
        %v950 = vadd.f32 0.0, %v949
        %v951 = vpop.f32.mrf.mxu0
        %v952 = vadd.f32 0.0, %v951
        %953 = vdwg.mxu0
        %v954 = vadd.f32 %v915, %v950
        %v955 = vadd.f32 %v916, %v952
        %v956 = vld [vmem:[%s3 + $0x2] sm:$0x1]
        %v958 = vperm.slane %v956, 0
        %v960 = vadd.f32 %v954, %v958
        %v961 = vadd.f32 %v955, %v958
        %962 = vst [vmem:[%s218 + $0x10] sm:$0xff] %v960
        %963 = vst [vmem:[%s218 + $0x30] sm:$0xff] %v961
        %s964 = sld [smem:[#allocation2 + $0xc]]
        %v965 = vstv %s964
        %v966 = vmul.f32 %v965, %v220
        %v967 = vmul.f32 %v965, %v224
        %s968 = sld [smem:[#allocation2 + $0xd]]
        %v969 = vstv %s968
        %v970 = vmul.f32 %v969, %v221
        %v971 = vmul.f32 %v969, %v225
        %v972 = vadd.f32 %v966, %v970
        %v973 = vadd.f32 %v967, %v971
        %s974 = sld [smem:[#allocation2 + $0xe]]
        %v975 = vstv %s974
        %v976 = vmul.f32 %v975, %v222
        %v977 = vmul.f32 %v975, %v226
        %v978 = vadd.f32 %v972, %v976
        %v979 = vadd.f32 %v973, %v977
        %s980 = sld [smem:[#allocation2 + $0xf]]
        %v981 = vstv %s980
        %v982 = vmul.f32 %v981, %v223
        %v983 = vmul.f32 %v981, %v227
        %v984 = vadd.f32 %v978, %v982
        %v985 = vadd.f32 %v979, %v983
        %v986 = vpack.c.bf16 %v985, %v984
        %s987 = sld [smem:[#allocation2 + $0x1c]]
        %v988 = vstv %s987
        %v989 = vmul.f32 %v988, %v220
        %v990 = vmul.f32 %v988, %v224
        %s991 = sld [smem:[#allocation2 + $0x1d]]
        %v992 = vstv %s991
        %v993 = vmul.f32 %v992, %v221
        %v994 = vmul.f32 %v992, %v225
        %v995 = vadd.f32 %v989, %v993
        %v996 = vadd.f32 %v990, %v994
        %s997 = sld [smem:[#allocation2 + $0x1e]]
        %v998 = vstv %s997
        %v999 = vmul.f32 %v998, %v222
        %v1000 = vmul.f32 %v998, %v226
        %v1001 = vadd.f32 %v995, %v999
        %v1002 = vadd.f32 %v996, %v1000
        %s1003 = sld [smem:[#allocation2 + $0x1f]]
        %v1004 = vstv %s1003
        %v1005 = vmul.f32 %v1004, %v223
        %v1006 = vmul.f32 %v1004, %v227
        %v1007 = vadd.f32 %v1001, %v1005
        %v1008 = vadd.f32 %v1002, %v1006
        %v1009 = vpack.c.bf16 %v1008, %v1007
        %1010 = vmatpush.bf16.msra.mxu0 %v377
        %1011 = vmatpush.bf16.msra.mxu0 %v376
        %1012 = vmatpush.bf16.msra.mxu0 %v375
        %1013 = vmatpush.bf16.msra.mxu0 %v374
        %1014 = vmatpush.bf16.msra.mxu0 %v373
        %1015 = vmatpush.bf16.msra.mxu0 %v372
        %1016 = vmatpush.bf16.msra.mxu0 %v371
        %1017 = vmatpush.bf16.msra.mxu0 %v370
        %1018 = vmatmul.bf16.gmra.mxu0 %v1009
        %v1019 = vpop.f32.mrf.mxu0
        %v1020 = vadd.f32 0.0, %v1019
        %v1021 = vpop.f32.mrf.mxu0
        %v1022 = vadd.f32 0.0, %v1021
        %1023 = vdwg.mxu0
        %1024 = vmatpush.bf16.msra.mxu0 %v439
        %1025 = vmatpush.bf16.msra.mxu0 %v438
        %1026 = vmatpush.bf16.msra.mxu0 %v437
        %1027 = vmatpush.bf16.msra.mxu0 %v436
        %1028 = vmatpush.bf16.msra.mxu0 %v435
        %1029 = vmatpush.bf16.msra.mxu0 %v434
        %1030 = vmatpush.bf16.msra.mxu0 %v433
        %1031 = vmatpush.bf16.msra.mxu0 %v432
        %1032 = vmatmul.bf16.gmra.mxu0 %v986
        %v1033 = vpop.f32.mrf.mxu0
        %v1034 = vadd.f32 %v1020, %v1033
        %v1035 = vpop.f32.mrf.mxu0
        %v1036 = vadd.f32 %v1022, %v1035
        %1037 = vdwg.mxu0
        %s1038 = sld [smem:[#allocation2 + $0x2c]]
        %v1039 = vstv %s1038
        %v1040 = vmul.f32 %v1039, %v220
        %v1041 = vmul.f32 %v1039, %v224
        %s1042 = sld [smem:[#allocation2 + $0x2d]]
        %v1043 = vstv %s1042
        %v1044 = vmul.f32 %v1043, %v221
        %v1045 = vmul.f32 %v1043, %v225
        %v1046 = vadd.f32 %v1040, %v1044
        %v1047 = vadd.f32 %v1041, %v1045
        %s1048 = sld [smem:[#allocation2 + $0x2e]]
        %v1049 = vstv %s1048
        %v1050 = vmul.f32 %v1049, %v222
        %v1051 = vmul.f32 %v1049, %v226
        %v1052 = vadd.f32 %v1046, %v1050
        %v1053 = vadd.f32 %v1047, %v1051
        %s1054 = sld [smem:[#allocation2 + $0x2f]]
        %v1055 = vstv %s1054
        %v1056 = vmul.f32 %v1055, %v223
        %v1057 = vmul.f32 %v1055, %v227
        %v1058 = vadd.f32 %v1052, %v1056
        %v1059 = vadd.f32 %v1053, %v1057
        %v1060 = vpack.c.bf16 %v1059, %v1058
        %1061 = vmatpush.bf16.msra.mxu0 %v524
        %1062 = vmatpush.bf16.msra.mxu0 %v523
        %1063 = vmatpush.bf16.msra.mxu0 %v522
        %1064 = vmatpush.bf16.msra.mxu0 %v521
        %1065 = vmatpush.bf16.msra.mxu0 %v520
        %1066 = vmatpush.bf16.msra.mxu0 %v519
        %1067 = vmatpush.bf16.msra.mxu0 %v518
        %1068 = vmatpush.bf16.msra.mxu0 %v517
        %1069 = vmatmul.bf16.gmra.mxu0 %v1060
        %v1070 = vpop.f32.mrf.mxu0
        %v1071 = vadd.f32 0.0, %v1070
        %v1072 = vpop.f32.mrf.mxu0
        %v1073 = vadd.f32 0.0, %v1072
        %1074 = vdwg.mxu0
        %v1075 = vadd.f32 %v1034, %v1071
        %v1076 = vadd.f32 %v1036, %v1073
        %s1077 = sld [smem:[#allocation2 + $0x3c]]
        %v1078 = vstv %s1077
        %v1079 = vmul.f32 %v1078, %v220
        %v1080 = vmul.f32 %v1078, %v224
        %s1081 = sld [smem:[#allocation2 + $0x3d]]
        %v1082 = vstv %s1081
        %v1083 = vmul.f32 %v1082, %v221
        %v1084 = vmul.f32 %v1082, %v225
        %v1085 = vadd.f32 %v1079, %v1083
        %v1086 = vadd.f32 %v1080, %v1084
        %s1087 = sld [smem:[#allocation2 + $0x3e]]
        %v1088 = vstv %s1087
        %v1089 = vmul.f32 %v1088, %v222
        %v1090 = vmul.f32 %v1088, %v226
        %v1091 = vadd.f32 %v1085, %v1089
        %v1092 = vadd.f32 %v1086, %v1090
        %s1093 = sld [smem:[#allocation2 + $0x3f]]
        %v1094 = vstv %s1093
        %v1095 = vmul.f32 %v1094, %v223
        %v1096 = vmul.f32 %v1094, %v227
        %v1097 = vadd.f32 %v1091, %v1095
        %v1098 = vadd.f32 %v1092, %v1096
        %v1099 = vpack.c.bf16 %v1098, %v1097
        %1100 = vmatpush.bf16.msra.mxu0 %v611
        %1101 = vmatpush.bf16.msra.mxu0 %v610
        %1102 = vmatpush.bf16.msra.mxu0 %v609
        %1103 = vmatpush.bf16.msra.mxu0 %v608
        %1104 = vmatpush.bf16.msra.mxu0 %v607
        %1105 = vmatpush.bf16.msra.mxu0 %v606
        %1106 = vmatpush.bf16.msra.mxu0 %v605
        %1107 = vmatpush.bf16.msra.mxu0 %v604
        %1108 = vmatmul.bf16.gmra.mxu0 %v1099
        %v1109 = vpop.f32.mrf.mxu0
        %v1110 = vadd.f32 0.0, %v1109
        %v1111 = vpop.f32.mrf.mxu0
        %v1112 = vadd.f32 0.0, %v1111
        %1113 = vdwg.mxu0
        %v1114 = vadd.f32 %v1075, %v1110
        %v1115 = vadd.f32 %v1076, %v1112
        %v1116 = vld [vmem:[%s3 + $0x3] sm:$0x1]
        %v1118 = vperm.slane %v1116, 0
        %v1120 = vadd.f32 %v1114, %v1118
        %v1121 = vadd.f32 %v1115, %v1118
        %1122 = vst [vmem:[%s218 + $0x18] sm:$0xff] %v1120
        %1123 = vst [vmem:[%s218 + $0x38] sm:$0xff] %v1121
        %s1124 = smul.u32 2, %s16
        %p1125 = scmp.lt.s32.totalorder %s1124, 3
        %s1126 = scalar_select %p1125, %s1124, 3
        %s1127 = smul.addr %s1126, 4
        %s1128 = smul.addr %s1127, 8
        %s1129 = scalar_lea.vmem %s4, %s1128
        // Predicated region
        $region41: #{ph_linear_forward.1} parent=35 // pred_check
          %p1130 = pneg %p123
        $region42: #{ph_linear_forward.1} parent=35 // pred_check_branch
          %1132 = sbr.rel (%p1130) target = $region44
        $region43: #{ph_linear_forward.1} parent=35 // pred_region
          %s1133 = smul.u32 2, %s16
        $region44: #{ph_linear_forward.1} parent=35 // pred_fallthru
          _
      $region36: #{ph_linear_forward.1} parent=5 // pred_fallthru
        _
      %p1134 = scmp.le.s32.totalorder 2, %s11
      // Predicated region
      $region45: #{ph_linear_forward.1} parent=5 // pred_check
        %p1135 = pneg %p1134
      $region46: #{ph_linear_forward.1} parent=5 // pred_check_branch
        %1137 = sbr.rel (%p1135) target = $region48
      $region47: #{ph_linear_forward.1} parent=5 // pred_region
        %s1138 = ssub.s32 %s11, 2
        // Predicated region
        $region49: #{ph_linear_forward.1} parent=47 // pred_check
          %p1139 = pneg %p129
        $region50: #{ph_linear_forward.1} parent=47 // pred_check_branch
          %1141 = sbr.rel (%p1139) target = $region52
        $region51: #{ph_linear_forward.1} parent=47 // pred_region
          %s1142 = smul.u32 2, %s17
          %p1143 = scmp.lt.s32.totalorder %s1142, 3
          %s1144 = scalar_select %p1143, %s1142, 3
          %s1145 = smul.addr %s1144, 4
          %s1146 = smul.addr %s1145, 8
          %s1147 = scalar_lea.vmem %s4, %s1146
        $region52: #{ph_linear_forward.1} parent=47 // pred_fallthru
          _
      $region48: #{ph_linear_forward.1} parent=5 // pred_fallthru
        _
    $region6: #{ph_linear_forward.1} parent=1 // loop_footer
      %s15 = sadd.s32 1, %s11
    $region7: #{ph_linear_forward.1} parent=1 // loop_footer_branch
      %10 = sbr.rel target = $region3
    $region8: #{ph_linear_forward.1} parent=1 // loop_exit
      _
    %1148 = vsyncpa [#allocation3], 1
    %s1149 = scalar_lea.sflag [#allocation3], 1
    %1150 = vsyncpa %s1149, 1

</llo_original>
